<compile_context>
chip_gen: v5e
topology: v5e:2x2
jax: 0.10.0
libtpu: 0.0.40
codegen_flags: <defaults>
</compile_context>

<pallas_src>
import math
import functools

import jax
import jax.numpy as jnp
from jax import lax
from jax.experimental import pallas as pl
from jax.experimental.pallas import tpu as pltpu

LN_EPS = 1e-5


def _layernorm(y, gamma, beta):
    mean = jnp.mean(y, axis=-1, keepdims=True)
    var = jnp.mean((y - mean) ** 2, axis=-1, keepdims=True)
    return (y - mean) * lax.rsqrt(var + LN_EPS) * gamma + beta


def encoder_layer_kernel(num_heads,
                         xq_ref, xf_ref,
                         wq_ref, bq_ref, wkv_ref, bkv_ref,
                         wo_ref, bo_ref,
                         ln1g_ref, ln1b_ref,
                         w1_ref, b1_ref, w2_ref, b2_ref,
                         ln2g_ref, ln2b_ref,
                         o_ref):
    # xq_ref block: (1, Tq, D) query-row tile; xf_ref block: (1, S, D) full sequence
    xq = xq_ref[0]                   # (Tq, D) f32
    xf = xf_ref[0]                   # (S,  D) f32
    Tq, D = xq.shape
    H = num_heads
    hd = D // H
    scale = hd ** -0.5

    bf16 = jnp.bfloat16
    xq_b = xq.astype(bf16)
    xf_b = xf.astype(bf16)

    # ---- QKV projections (bf16 MXU, f32 accumulate) ----
    q = jnp.dot(xq_b, wq_ref[...], preferred_element_type=jnp.float32) + bq_ref[...]    # (Tq, D)
    kv = jnp.dot(xf_b, wkv_ref[...], preferred_element_type=jnp.float32) + bkv_ref[...]  # (S, 2D)
    k = kv[:, :D]
    v = kv[:, D:]

    # Fold softmax scale into q (multiplies a (Tq, D) tile instead of the (Tq, S) scores).
    q = q * scale

    # ---- head-batched attention: (H, rows, hd) with head as the batch dim ----
    def split_heads(t):
        return jnp.stack([t[:, h * hd:(h + 1) * hd] for h in range(H)], axis=0)

    qh = split_heads(q).astype(bf16)       # (H, Tq, hd)
    kh = split_heads(k).astype(bf16)       # (H, S,  hd)
    vh = split_heads(v).astype(bf16)       # (H, S,  hd)

    s = jnp.einsum('hqd,hkd->hqk', qh, kh,
                   preferred_element_type=jnp.float32)        # (H, Tq, S) f32
    s = s - jnp.max(s, axis=-1, keepdims=True)
    p = jnp.exp(s)
    denom = jnp.sum(p, axis=-1, keepdims=True)
    p = p * pl.reciprocal(denom, approx=True)
    # TODO(synk): for very long S, switch to flash-style KV tiling with an online softmax
    # accumulator instead of materializing the full (H, Tq, S) score matrix.
    ctx = jnp.einsum('hqk,hkd->hqd', p.astype(bf16), vh,
                     preferred_element_type=jnp.float32)      # (H, Tq, hd) f32
    attn = jnp.concatenate([ctx[h] for h in range(H)], axis=-1)   # (Tq, D)

    attn = jnp.dot(attn.astype(bf16), wo_ref[...],
                   preferred_element_type=jnp.float32) + bo_ref[...]

    # ---- residual + layernorm 1 ----
    y = _layernorm(xq + attn, ln1g_ref[...], ln1b_ref[...])

    # ---- feed-forward ----
    h1 = jnp.dot(y.astype(bf16), w1_ref[...],
                 preferred_element_type=jnp.float32) + b1_ref[...]
    h1 = jnp.maximum(h1, 0.0)
    ff = jnp.dot(h1.astype(bf16), w2_ref[...],
                 preferred_element_type=jnp.float32) + b2_ref[...]

    # ---- residual + layernorm 2 ----
    o_ref[0] = _layernorm(y + ff, ln2g_ref[...], ln2b_ref[...])


def encoder_layer_pallas(x, params, num_heads, block_q=128):
    """x: (B, S, D) float32.  params: dict of layer weights ((in,out) layout, bf16)."""
    B, S, D = x.shape
    d_ff = params["w1_t"].shape[1]
    Tq = min(S, block_q)
    assert S % Tq == 0, "sequence length must be divisible by the query tile"
    n_q = S // Tq

    def full(shape):
        n = len(shape)
        return pl.BlockSpec(shape, lambda b, i, _n=n: (0,) * _n)

    in_specs = [
        pl.BlockSpec((1, Tq, D), lambda b, i: (b, i, 0)),      # x (query-row tile)
        pl.BlockSpec((1, S, D), lambda b, i: (b, 0, 0)),       # x (full seq, for K/V)
        full((D, D)),                                          # wq_t  (bf16)
        full((1, D)),                                          # bq
        full((D, 2 * D)),                                      # wkv_t (bf16)
        full((1, 2 * D)),                                      # bkv
        full((D, D)),                                          # wo_t  (bf16)
        full((1, D)),                                          # bo
        full((1, D)), full((1, D)),                            # ln1 gamma/beta
        full((D, d_ff)), full((1, d_ff)),                      # w1_t (bf16), b1
        full((d_ff, D)), full((1, D)),                         # w2_t (bf16), b2
        full((1, D)), full((1, D)),                            # ln2 gamma/beta
    ]

    return pl.pallas_call(
        functools.partial(encoder_layer_kernel, num_heads),
        out_shape=jax.ShapeDtypeStruct((B, S, D), jnp.float32),
        grid_spec=pltpu.PrefetchScalarGridSpec(
            num_scalar_prefetch=0,
            grid=(B, n_q),
            in_specs=in_specs,
            out_specs=pl.BlockSpec((1, Tq, D), lambda b, i: (b, i, 0)),
        ),
        compiler_params=pltpu.CompilerParams(
            dimension_semantics=("parallel", "parallel"),
            vmem_limit_bytes=64 * 1024 * 1024),
    )(x, x,
      params["wq_t"], params["bq"], params["wkv_t"], params["bkv"],
      params["wo_t"], params["bo"],
      params["ln1_g"], params["ln1_b"],
      params["w1_t"], params["b1"], params["w2_t"], params["b2"],
      params["ln2_g"], params["ln2_b"])


# ---------------- parameter init (deterministic, synthetic) ----------------

def init_layer_params(key, d_model, d_ff):
    ks = jax.random.split(key, 10)
    s = 0.02
    bf16 = jnp.bfloat16
    # PyTorch Linear weight layout is (out, in); we pre-transpose to (in, out).
    wqkv = jax.random.normal(ks[0], (3 * d_model, d_model)) * s      # (3D, D)
    return {
        "wq_t":  wqkv[:d_model].T.astype(bf16),                      # (D, D)
        "bq":    (jax.random.normal(ks[1], (1, d_model)) * s).astype(jnp.float32),
        "wkv_t": wqkv[d_model:].T.astype(bf16),                      # (D, 2D)
        "bkv":   (jax.random.normal(ks[2], (1, 2 * d_model)) * s).astype(jnp.float32),
        "wo_t":  (jax.random.normal(ks[3], (d_model, d_model)) * s).T.astype(bf16),
        "bo":    (jax.random.normal(ks[4], (1, d_model)) * s).astype(jnp.float32),
        "ln1_g": (1.0 + jax.random.normal(ks[5], (1, d_model)) * s).astype(jnp.float32),
        "ln1_b": (jax.random.normal(ks[6], (1, d_model)) * s).astype(jnp.float32),
        "w1_t":  (jax.random.normal(ks[7], (d_ff, d_model)) * s).T.astype(bf16),   # (D, d_ff)
        "b1":    jnp.zeros((1, d_ff), jnp.float32),
        "w2_t":  (jax.random.normal(ks[8], (d_model, d_ff)) * s).T.astype(bf16),   # (d_ff, D)
        "b2":    (jax.random.normal(ks[9], (1, d_model)) * s).astype(jnp.float32),
        "ln2_g": jnp.ones((1, d_model), jnp.float32),
        "ln2_b": jnp.zeros((1, d_model), jnp.float32),
    }


def positional_encoding(seq_len, d_model):
    position = jnp.arange(seq_len, dtype=jnp.float32)[:, None]                        # (S, 1)
    div_term = jnp.exp(jnp.arange(0, d_model, 2, dtype=jnp.float32)
                       * (-math.log(10000.0) / d_model))                              # (D/2,)
    sin = jnp.sin(position * div_term)                                                # (S, D/2)
    cos = jnp.cos(position * div_term)                                                # (S, D/2)
    return jnp.stack([sin, cos], axis=-1).reshape(seq_len, d_model)                   # (S, D)


def transformer_forward(tokens, embedding, layer_params, num_heads):
    B, S = tokens.shape
    D = embedding.shape[1]
    x = jnp.take(embedding, tokens, axis=0)            # (B, S, D) embedding lookup (glue)
    x = x + positional_encoding(S, D)[None]            # positional encoding (glue)
    # TODO(synk): dropout layers are identity here (inference semantics).
    # TODO(synk): cross-layer weight prefetch (P10 DMA futures) would hide per-layer
    # weight HBM loads; left out to keep each layer a self-contained pallas_call.
    for p in layer_params:
        x = encoder_layer_pallas(x, p, num_heads)      # Pallas hot path per layer
    return x


# ---------------- pure-JAX reference for sanity check (f32 math) ----------------

def _ref_layer(x, p, num_heads):
    B, S, D = x.shape
    hd = D // num_heads
    wq = p["wq_t"].astype(jnp.float32)
    wkv = p["wkv_t"].astype(jnp.float32)
    q = x @ wq + p["bq"]
    kv = x @ wkv + p["bkv"]
    k, v = kv[..., :D], kv[..., D:]

    def split(t):
        return t.reshape(B, S, num_heads, hd).transpose(0, 2, 1, 3)

    qh, kh, vh = split(q), split(k), split(v)
    scores = jnp.einsum("bhqd,bhkd->bhqk", qh, kh) * hd ** -0.5
    probs = jax.nn.softmax(scores, axis=-1)
    attn = jnp.einsum("bhqk,bhkd->bhqd", probs, vh).transpose(0, 2, 1, 3).reshape(B, S, D)
    attn = attn @ p["wo_t"].astype(jnp.float32) + p["bo"]
    y = _layernorm(x + attn, p["ln1_g"], p["ln1_b"])
    ff = jnp.maximum(y @ p["w1_t"].astype(jnp.float32) + p["b1"], 0.0) \
        @ p["w2_t"].astype(jnp.float32) + p["b2"]
    return _layernorm(y + ff, p["ln2_g"], p["ln2_b"])


def transformer_ref(tokens, embedding, layer_params, num_heads):
    B, S = tokens.shape
    D = embedding.shape[1]
    x = jnp.take(embedding, tokens, axis=0) + positional_encoding(S, D)[None]
    for p in layer_params:
        x = _ref_layer(x, p, num_heads)
    return x


if __name__ == "__main__":
    # small shapes consistent with the module
    num_layers, d_model, num_heads, d_ff, vocab_size = 2, 32, 4, 64, 50
    B, S = 2, 8

    key = jax.random.PRNGKey(0)
    k_emb, k_tok, *k_layers = jax.random.split(key, 2 + num_layers)

    embedding = jax.random.normal(k_emb, (vocab_size, d_model), jnp.float32) * 0.02
    tokens = jax.random.randint(k_tok, (B, S), 0, vocab_size, dtype=jnp.int32)
    layer_params = [init_layer_params(k, d_model, d_ff) for k in k_layers]

    out = transformer_forward(tokens, embedding, layer_params, num_heads)
    out = jax.block_until_ready(out)

    ref = transformer_ref(tokens, embedding, layer_params, num_heads)
    assert out.shape == (B, S, d_model)
    # Kernel runs its matmuls in bf16 (f32 accumulate); reference is pure f32.
    assert jnp.allclose(out, ref, atol=3e-2, rtol=3e-2), "mismatch vs reference"

    print("KERNEL_OK")
</pallas_src>

<mosaic_0001>
module attributes {stable_mosaic.version = 11 : i64} {
  func.func @encoder_layer_kernel(%arg0: i32, %arg1: i32, %arg2: memref<1x8x32xf32, #tpu.memory_space<vmem>>, %arg3: memref<1x8x32xf32, #tpu.memory_space<vmem>>, %arg4: memref<32x32xbf16, #tpu.memory_space<vmem>>, %arg5: memref<1x32xf32, #tpu.memory_space<vmem>>, %arg6: memref<32x64xbf16, #tpu.memory_space<vmem>>, %arg7: memref<1x64xf32, #tpu.memory_space<vmem>>, %arg8: memref<32x32xbf16, #tpu.memory_space<vmem>>, %arg9: memref<1x32xf32, #tpu.memory_space<vmem>>, %arg10: memref<1x32xf32, #tpu.memory_space<vmem>>, %arg11: memref<1x32xf32, #tpu.memory_space<vmem>>, %arg12: memref<32x64xbf16, #tpu.memory_space<vmem>>, %arg13: memref<1x64xf32, #tpu.memory_space<vmem>>, %arg14: memref<64x32xbf16, #tpu.memory_space<vmem>>, %arg15: memref<1x32xf32, #tpu.memory_space<vmem>>, %arg16: memref<1x32xf32, #tpu.memory_space<vmem>>, %arg17: memref<1x32xf32, #tpu.memory_space<vmem>>, %arg18: memref<1x8x32xf32, #tpu.memory_space<vmem>>) attributes {dimension_semantics = [#tpu.dimension_semantics<parallel>, #tpu.dimension_semantics<parallel>], iteration_bounds = array<i64: 2, 1>, scalar_prefetch = 0 : i64, scratch_operands = 0 : i64, tpu.core_type = #tpu.core_type<tc>, window_params = [{transform_indices = @transform_0, window_bounds = array<i64: 1, 8, 32>}, {transform_indices = @transform_1, window_bounds = array<i64: 1, 8, 32>}, {pipeline_mode = #tpu.pipeline_mode<synchronous>, transform_indices = @transform_2, window_bounds = array<i64: 32, 32>}, {pipeline_mode = #tpu.pipeline_mode<synchronous>, transform_indices = @transform_3, window_bounds = array<i64: 1, 32>}, {pipeline_mode = #tpu.pipeline_mode<synchronous>, transform_indices = @transform_4, window_bounds = array<i64: 32, 64>}, {pipeline_mode = #tpu.pipeline_mode<synchronous>, transform_indices = @transform_5, window_bounds = array<i64: 1, 64>}, {pipeline_mode = #tpu.pipeline_mode<synchronous>, transform_indices = @transform_6, window_bounds = array<i64: 32, 32>}, {pipeline_mode = #tpu.pipeline_mode<synchronous>, transform_indices = @transform_7, window_bounds = array<i64: 1, 32>}, {pipeline_mode = #tpu.pipeline_mode<synchronous>, transform_indices = @transform_8, window_bounds = array<i64: 1, 32>}, {pipeline_mode = #tpu.pipeline_mode<synchronous>, transform_indices = @transform_9, window_bounds = array<i64: 1, 32>}, {pipeline_mode = #tpu.pipeline_mode<synchronous>, transform_indices = @transform_10, window_bounds = array<i64: 32, 64>}, {pipeline_mode = #tpu.pipeline_mode<synchronous>, transform_indices = @transform_11, window_bounds = array<i64: 1, 64>}, {pipeline_mode = #tpu.pipeline_mode<synchronous>, transform_indices = @transform_12, window_bounds = array<i64: 64, 32>}, {pipeline_mode = #tpu.pipeline_mode<synchronous>, transform_indices = @transform_13, window_bounds = array<i64: 1, 32>}, {pipeline_mode = #tpu.pipeline_mode<synchronous>, transform_indices = @transform_14, window_bounds = array<i64: 1, 32>}, {pipeline_mode = #tpu.pipeline_mode<synchronous>, transform_indices = @transform_15, window_bounds = array<i64: 1, 32>}, {transform_indices = @transform_16, window_bounds = array<i64: 1, 8, 32>}]} {
    %c0 = arith.constant 0 : index
    %c0_0 = arith.constant 0 : index
    %c0_1 = arith.constant 0 : index
    %0 = vector.load %arg2[%c0, %c0_0, %c0_1] : memref<1x8x32xf32, #tpu.memory_space<vmem>>, vector<1x8x32xf32>
    %1 = vector.shape_cast %0 : vector<1x8x32xf32> to vector<8x32xf32>
    %c0_2 = arith.constant 0 : index
    %c0_3 = arith.constant 0 : index
    %c0_4 = arith.constant 0 : index
    %2 = vector.load %arg3[%c0_2, %c0_3, %c0_4] : memref<1x8x32xf32, #tpu.memory_space<vmem>>, vector<1x8x32xf32>
    %3 = vector.shape_cast %2 : vector<1x8x32xf32> to vector<8x32xf32>
    %4 = arith.truncf %1 : vector<8x32xf32> to vector<8x32xbf16>
    %5 = arith.truncf %3 : vector<8x32xf32> to vector<8x32xbf16>
    %c0_5 = arith.constant 0 : index
    %c0_6 = arith.constant 0 : index
    %6 = vector.load %arg4[%c0_5, %c0_6] : memref<32x32xbf16, #tpu.memory_space<vmem>>, vector<32x32xbf16>
    %cst = arith.constant dense<0.000000e+00> : vector<8x32xf32>
    %7 = tpu.matmul %4, %6, %cst {dimension_numbers = #tpu.dot_dimension_numbers<[1], [0], [0], [1], [0, 0, 1, 1], [], []>} : vector<8x32xbf16>, vector<32x32xbf16>, vector<8x32xf32> -> vector<8x32xf32>
    %c0_7 = arith.constant 0 : index
    %c0_8 = arith.constant 0 : index
    %8 = vector.load %arg5[%c0_7, %c0_8] : memref<1x32xf32, #tpu.memory_space<vmem>>, vector<1x32xf32>
    %9 = vector.broadcast %8 : vector<1x32xf32> to vector<8x32xf32>
    %10 = arith.addf %7, %9 : vector<8x32xf32>
    %c0_9 = arith.constant 0 : index
    %c0_10 = arith.constant 0 : index
    %11 = vector.load %arg6[%c0_9, %c0_10] : memref<32x64xbf16, #tpu.memory_space<vmem>>, vector<32x64xbf16>
    %cst_11 = arith.constant dense<0.000000e+00> : vector<8x64xf32>
    %12 = tpu.matmul %5, %11, %cst_11 {dimension_numbers = #tpu.dot_dimension_numbers<[1], [0], [0], [1], [0, 0, 1, 1], [], []>} : vector<8x32xbf16>, vector<32x64xbf16>, vector<8x64xf32> -> vector<8x64xf32>
    %c0_12 = arith.constant 0 : index
    %c0_13 = arith.constant 0 : index
    %13 = vector.load %arg7[%c0_12, %c0_13] : memref<1x64xf32, #tpu.memory_space<vmem>>, vector<1x64xf32>
    %14 = vector.broadcast %13 : vector<1x64xf32> to vector<8x64xf32>
    %15 = arith.addf %12, %14 : vector<8x64xf32>
    %16 = vector.extract_strided_slice %15 {offsets = [0, 0], sizes = [8, 32], strides = [1, 1]} : vector<8x64xf32> to vector<8x32xf32>
    %17 = vector.extract_strided_slice %15 {offsets = [0, 32], sizes = [8, 32], strides = [1, 1]} : vector<8x64xf32> to vector<8x32xf32>
    %cst_14 = arith.constant 0.353553385 : f32
    %18 = vector.broadcast %cst_14 : f32 to vector<8x32xf32>
    %19 = arith.mulf %10, %18 : vector<8x32xf32>
    %20 = vector.extract_strided_slice %19 {offsets = [0, 0], sizes = [8, 8], strides = [1, 1]} : vector<8x32xf32> to vector<8x8xf32>
    %21 = vector.extract_strided_slice %19 {offsets = [0, 8], sizes = [8, 8], strides = [1, 1]} : vector<8x32xf32> to vector<8x8xf32>
    %22 = vector.extract_strided_slice %19 {offsets = [0, 16], sizes = [8, 8], strides = [1, 1]} : vector<8x32xf32> to vector<8x8xf32>
    %23 = vector.extract_strided_slice %19 {offsets = [0, 24], sizes = [8, 8], strides = [1, 1]} : vector<8x32xf32> to vector<8x8xf32>
    %24 = vector.shape_cast %20 : vector<8x8xf32> to vector<1x8x8xf32>
    %25 = vector.shape_cast %21 : vector<8x8xf32> to vector<1x8x8xf32>
    %26 = vector.shape_cast %22 : vector<8x8xf32> to vector<1x8x8xf32>
    %27 = vector.shape_cast %23 : vector<8x8xf32> to vector<1x8x8xf32>
    %28 = tpu.concatenate %24, %25, %26, %27 in 0 : vector<1x8x8xf32>, vector<1x8x8xf32>, vector<1x8x8xf32>, vector<1x8x8xf32> -> vector<4x8x8xf32>
    %29 = arith.truncf %28 : vector<4x8x8xf32> to vector<4x8x8xbf16>
    %30 = vector.extract_strided_slice %16 {offsets = [0, 0], sizes = [8, 8], strides = [1, 1]} : vector<8x32xf32> to vector<8x8xf32>
    %31 = vector.extract_strided_slice %16 {offsets = [0, 8], sizes = [8, 8], strides = [1, 1]} : vector<8x32xf32> to vector<8x8xf32>
    %32 = vector.extract_strided_slice %16 {offsets = [0, 16], sizes = [8, 8], strides = [1, 1]} : vector<8x32xf32> to vector<8x8xf32>
    %33 = vector.extract_strided_slice %16 {offsets = [0, 24], sizes = [8, 8], strides = [1, 1]} : vector<8x32xf32> to vector<8x8xf32>
    %34 = vector.shape_cast %30 : vector<8x8xf32> to vector<1x8x8xf32>
    %35 = vector.shape_cast %31 : vector<8x8xf32> to vector<1x8x8xf32>
    %36 = vector.shape_cast %32 : vector<8x8xf32> to vector<1x8x8xf32>
    %37 = vector.shape_cast %33 : vector<8x8xf32> to vector<1x8x8xf32>
    %38 = tpu.concatenate %34, %35, %36, %37 in 0 : vector<1x8x8xf32>, vector<1x8x8xf32>, vector<1x8x8xf32>, vector<1x8x8xf32> -> vector<4x8x8xf32>
    %39 = arith.truncf %38 : vector<4x8x8xf32> to vector<4x8x8xbf16>
    %40 = vector.extract_strided_slice %17 {offsets = [0, 0], sizes = [8, 8], strides = [1, 1]} : vector<8x32xf32> to vector<8x8xf32>
    %41 = vector.extract_strided_slice %17 {offsets = [0, 8], sizes = [8, 8], strides = [1, 1]} : vector<8x32xf32> to vector<8x8xf32>
    %42 = vector.extract_strided_slice %17 {offsets = [0, 16], sizes = [8, 8], strides = [1, 1]} : vector<8x32xf32> to vector<8x8xf32>
    %43 = vector.extract_strided_slice %17 {offsets = [0, 24], sizes = [8, 8], strides = [1, 1]} : vector<8x32xf32> to vector<8x8xf32>
    %44 = vector.shape_cast %40 : vector<8x8xf32> to vector<1x8x8xf32>
    %45 = vector.shape_cast %41 : vector<8x8xf32> to vector<1x8x8xf32>
    %46 = vector.shape_cast %42 : vector<8x8xf32> to vector<1x8x8xf32>
    %47 = vector.shape_cast %43 : vector<8x8xf32> to vector<1x8x8xf32>
    %48 = tpu.concatenate %44, %45, %46, %47 in 0 : vector<1x8x8xf32>, vector<1x8x8xf32>, vector<1x8x8xf32>, vector<1x8x8xf32> -> vector<4x8x8xf32>
    %49 = arith.truncf %48 : vector<4x8x8xf32> to vector<4x8x8xbf16>
    "tpu.trace_start"() <{level = 10 : i32, message = "hqd,hkd->hqk"}> : () -> ()
    %cst_15 = arith.constant dense<0.000000e+00> : vector<4x8x8xf32>
    %50 = tpu.matmul %29, %39, %cst_15 {dimension_numbers = #tpu.dot_dimension_numbers<[2], [2], [1], [1], [0, 0, 0, 1, 1, 1], [0], [0]>} : vector<4x8x8xbf16>, vector<4x8x8xbf16>, vector<4x8x8xf32> -> vector<4x8x8xf32>
    "tpu.trace_stop"() : () -> ()
    %cst_16 = arith.constant dense<0xFF800000> : vector<4x8xf32>
    %51 = vector.multi_reduction <maximumf>, %50, %cst_16 [2] : vector<4x8x8xf32> to vector<4x8xf32>
    %52 = vector.shape_cast %51 : vector<4x8xf32> to vector<4x8x1xf32>
    %53 = vector.broadcast %52 : vector<4x8x1xf32> to vector<4x8x8xf32>
    %54 = arith.subf %50, %53 : vector<4x8x8xf32>
    %55 = math.exp %54 : vector<4x8x8xf32>
    %cst_17 = arith.constant dense<0.000000e+00> : vector<4x8xf32>
    %56 = vector.multi_reduction <add>, %55, %cst_17 [2] : vector<4x8x8xf32> to vector<4x8xf32>
    %57 = vector.shape_cast %56 : vector<4x8xf32> to vector<4x8x1xf32>
    %58 = tpu.reciprocal %57 {approx = true} : vector<4x8x1xf32> -> vector<4x8x1xf32>
    %59 = vector.broadcast %58 : vector<4x8x1xf32> to vector<4x8x8xf32>
    %60 = arith.mulf %55, %59 : vector<4x8x8xf32>
    %61 = arith.truncf %60 : vector<4x8x8xf32> to vector<4x8x8xbf16>
    "tpu.trace_start"() <{level = 10 : i32, message = "hqk,hkd->hqd"}> : () -> ()
    %cst_18 = arith.constant dense<0.000000e+00> : vector<4x8x8xf32>
    %62 = tpu.matmul %61, %49, %cst_18 {dimension_numbers = #tpu.dot_dimension_numbers<[2], [1], [1], [2], [0, 0, 0, 1, 1, 2], [0], [0]>} : vector<4x8x8xbf16>, vector<4x8x8xbf16>, vector<4x8x8xf32> -> vector<4x8x8xf32>
    "tpu.trace_stop"() : () -> ()
    %63 = vector.extract_strided_slice %62 {offsets = [0, 0, 0], sizes = [1, 8, 8], strides = [1, 1, 1]} : vector<4x8x8xf32> to vector<1x8x8xf32>
    %64 = vector.shape_cast %63 : vector<1x8x8xf32> to vector<8x8xf32>
    %65 = vector.extract_strided_slice %62 {offsets = [1, 0, 0], sizes = [1, 8, 8], strides = [1, 1, 1]} : vector<4x8x8xf32> to vector<1x8x8xf32>
    %66 = vector.shape_cast %65 : vector<1x8x8xf32> to vector<8x8xf32>
    %67 = vector.extract_strided_slice %62 {offsets = [2, 0, 0], sizes = [1, 8, 8], strides = [1, 1, 1]} : vector<4x8x8xf32> to vector<1x8x8xf32>
    %68 = vector.shape_cast %67 : vector<1x8x8xf32> to vector<8x8xf32>
    %69 = vector.extract_strided_slice %62 {offsets = [3, 0, 0], sizes = [1, 8, 8], strides = [1, 1, 1]} : vector<4x8x8xf32> to vector<1x8x8xf32>
    %70 = vector.shape_cast %69 : vector<1x8x8xf32> to vector<8x8xf32>
    %71 = tpu.concatenate %64, %66, %68, %70 in 1 : vector<8x8xf32>, vector<8x8xf32>, vector<8x8xf32>, vector<8x8xf32> -> vector<8x32xf32>
    %72 = arith.truncf %71 : vector<8x32xf32> to vector<8x32xbf16>
    %c0_19 = arith.constant 0 : index
    %c0_20 = arith.constant 0 : index
    %73 = vector.load %arg8[%c0_19, %c0_20] : memref<32x32xbf16, #tpu.memory_space<vmem>>, vector<32x32xbf16>
    %cst_21 = arith.constant dense<0.000000e+00> : vector<8x32xf32>
    %74 = tpu.matmul %72, %73, %cst_21 {dimension_numbers = #tpu.dot_dimension_numbers<[1], [0], [0], [1], [0, 0, 1, 1], [], []>} : vector<8x32xbf16>, vector<32x32xbf16>, vector<8x32xf32> -> vector<8x32xf32>
    %c0_22 = arith.constant 0 : index
    %c0_23 = arith.constant 0 : index
    %75 = vector.load %arg9[%c0_22, %c0_23] : memref<1x32xf32, #tpu.memory_space<vmem>>, vector<1x32xf32>
    %76 = vector.broadcast %75 : vector<1x32xf32> to vector<8x32xf32>
    %77 = arith.addf %74, %76 : vector<8x32xf32>
    %78 = arith.addf %1, %77 : vector<8x32xf32>
    %c0_24 = arith.constant 0 : index
    %c0_25 = arith.constant 0 : index
    %79 = vector.load %arg10[%c0_24, %c0_25] : memref<1x32xf32, #tpu.memory_space<vmem>>, vector<1x32xf32>
    %c0_26 = arith.constant 0 : index
    %c0_27 = arith.constant 0 : index
    %80 = vector.load %arg11[%c0_26, %c0_27] : memref<1x32xf32, #tpu.memory_space<vmem>>, vector<1x32xf32>
    %cst_28 = arith.constant dense<0.000000e+00> : vector<8xf32>
    %81 = vector.multi_reduction <add>, %78, %cst_28 [1] : vector<8x32xf32> to vector<8xf32>
    %82 = vector.shape_cast %81 : vector<8xf32> to vector<8x1xf32>
    %cst_29 = arith.constant 3.200000e+01 : f32
    %83 = vector.broadcast %cst_29 : f32 to vector<8x1xf32>
    %84 = arith.divf %82, %83 : vector<8x1xf32>
    %85 = vector.broadcast %84 : vector<8x1xf32> to vector<8x32xf32>
    %86 = arith.subf %78, %85 : vector<8x32xf32>
    %87 = arith.mulf %86, %86 : vector<8x32xf32>
    %cst_30 = arith.constant dense<0.000000e+00> : vector<8xf32>
    %88 = vector.multi_reduction <add>, %87, %cst_30 [1] : vector<8x32xf32> to vector<8xf32>
    %89 = vector.shape_cast %88 : vector<8xf32> to vector<8x1xf32>
    %cst_31 = arith.constant 3.200000e+01 : f32
    %90 = vector.broadcast %cst_31 : f32 to vector<8x1xf32>
    %91 = arith.divf %89, %90 : vector<8x1xf32>
    %92 = vector.broadcast %84 : vector<8x1xf32> to vector<8x32xf32>
    %93 = arith.subf %78, %92 : vector<8x32xf32>
    %cst_32 = arith.constant 9.99999974E-6 : f32
    %94 = vector.broadcast %cst_32 : f32 to vector<8x1xf32>
    %95 = arith.addf %91, %94 : vector<8x1xf32>
    %96 = math.rsqrt %95 : vector<8x1xf32>
    %97 = vector.broadcast %96 : vector<8x1xf32> to vector<8x32xf32>
    %98 = arith.mulf %93, %97 : vector<8x32xf32>
    %99 = vector.broadcast %79 : vector<1x32xf32> to vector<8x32xf32>
    %100 = arith.mulf %98, %99 : vector<8x32xf32>
    %101 = vector.broadcast %80 : vector<1x32xf32> to vector<8x32xf32>
    %102 = arith.addf %100, %101 : vector<8x32xf32>
    %103 = arith.truncf %102 : vector<8x32xf32> to vector<8x32xbf16>
    %c0_33 = arith.constant 0 : index
    %c0_34 = arith.constant 0 : index
    %104 = vector.load %arg12[%c0_33, %c0_34] : memref<32x64xbf16, #tpu.memory_space<vmem>>, vector<32x64xbf16>
    %cst_35 = arith.constant dense<0.000000e+00> : vector<8x64xf32>
    %105 = tpu.matmul %103, %104, %cst_35 {dimension_numbers = #tpu.dot_dimension_numbers<[1], [0], [0], [1], [0, 0, 1, 1], [], []>} : vector<8x32xbf16>, vector<32x64xbf16>, vector<8x64xf32> -> vector<8x64xf32>
    %c0_36 = arith.constant 0 : index
    %c0_37 = arith.constant 0 : index
    %106 = vector.load %arg13[%c0_36, %c0_37] : memref<1x64xf32, #tpu.memory_space<vmem>>, vector<1x64xf32>
    %107 = vector.broadcast %106 : vector<1x64xf32> to vector<8x64xf32>
    %108 = arith.addf %105, %107 : vector<8x64xf32>
    %cst_38 = arith.constant 0.000000e+00 : f32
    %109 = vector.broadcast %cst_38 : f32 to vector<8x64xf32>
    %110 = arith.maximumf %108, %109 : vector<8x64xf32>
    %111 = arith.truncf %110 : vector<8x64xf32> to vector<8x64xbf16>
    %c0_39 = arith.constant 0 : index
    %c0_40 = arith.constant 0 : index
    %112 = vector.load %arg14[%c0_39, %c0_40] : memref<64x32xbf16, #tpu.memory_space<vmem>>, vector<64x32xbf16>
    %cst_41 = arith.constant dense<0.000000e+00> : vector<8x32xf32>
    %113 = tpu.matmul %111, %112, %cst_41 {dimension_numbers = #tpu.dot_dimension_numbers<[1], [0], [0], [1], [0, 0, 1, 1], [], []>} : vector<8x64xbf16>, vector<64x32xbf16>, vector<8x32xf32> -> vector<8x32xf32>
    %c0_42 = arith.constant 0 : index
    %c0_43 = arith.constant 0 : index
    %114 = vector.load %arg15[%c0_42, %c0_43] : memref<1x32xf32, #tpu.memory_space<vmem>>, vector<1x32xf32>
    %115 = vector.broadcast %114 : vector<1x32xf32> to vector<8x32xf32>
    %116 = arith.addf %113, %115 : vector<8x32xf32>
    %117 = arith.addf %102, %116 : vector<8x32xf32>
    %c0_44 = arith.constant 0 : index
    %c0_45 = arith.constant 0 : index
    %118 = vector.load %arg16[%c0_44, %c0_45] : memref<1x32xf32, #tpu.memory_space<vmem>>, vector<1x32xf32>
    %c0_46 = arith.constant 0 : index
    %c0_47 = arith.constant 0 : index
    %119 = vector.load %arg17[%c0_46, %c0_47] : memref<1x32xf32, #tpu.memory_space<vmem>>, vector<1x32xf32>
    %cst_48 = arith.constant dense<0.000000e+00> : vector<8xf32>
    %120 = vector.multi_reduction <add>, %117, %cst_48 [1] : vector<8x32xf32> to vector<8xf32>
    %121 = vector.shape_cast %120 : vector<8xf32> to vector<8x1xf32>
    %cst_49 = arith.constant 3.200000e+01 : f32
    %122 = vector.broadcast %cst_49 : f32 to vector<8x1xf32>
    %123 = arith.divf %121, %122 : vector<8x1xf32>
    %124 = vector.broadcast %123 : vector<8x1xf32> to vector<8x32xf32>
    %125 = arith.subf %117, %124 : vector<8x32xf32>
    %126 = arith.mulf %125, %125 : vector<8x32xf32>
    %cst_50 = arith.constant dense<0.000000e+00> : vector<8xf32>
    %127 = vector.multi_reduction <add>, %126, %cst_50 [1] : vector<8x32xf32> to vector<8xf32>
    %128 = vector.shape_cast %127 : vector<8xf32> to vector<8x1xf32>
    %cst_51 = arith.constant 3.200000e+01 : f32
    %129 = vector.broadcast %cst_51 : f32 to vector<8x1xf32>
    %130 = arith.divf %128, %129 : vector<8x1xf32>
    %131 = vector.broadcast %123 : vector<8x1xf32> to vector<8x32xf32>
    %132 = arith.subf %117, %131 : vector<8x32xf32>
    %cst_52 = arith.constant 9.99999974E-6 : f32
    %133 = vector.broadcast %cst_52 : f32 to vector<8x1xf32>
    %134 = arith.addf %130, %133 : vector<8x1xf32>
    %135 = math.rsqrt %134 : vector<8x1xf32>
    %136 = vector.broadcast %135 : vector<8x1xf32> to vector<8x32xf32>
    %137 = arith.mulf %132, %136 : vector<8x32xf32>
    %138 = vector.broadcast %118 : vector<1x32xf32> to vector<8x32xf32>
    %139 = arith.mulf %137, %138 : vector<8x32xf32>
    %140 = vector.broadcast %119 : vector<1x32xf32> to vector<8x32xf32>
    %141 = arith.addf %139, %140 : vector<8x32xf32>
    %c0_53 = arith.constant 0 : index
    %c0_54 = arith.constant 0 : index
    %c0_55 = arith.constant 0 : index
    %142 = vector.load %arg18[%c0_53, %c0_54, %c0_55] : memref<1x8x32xf32, #tpu.memory_space<vmem>>, vector<1x8x32xf32>
    %143 = vector.shape_cast %142 : vector<1x8x32xf32> to vector<8x32xf32>
    %144 = vector.shape_cast %141 : vector<8x32xf32> to vector<1x8x32xf32>
    tpu.vector_store %arg18[%c0_53, %c0_54, %c0_55], %144 {strides = array<i32>} : memref<1x8x32xf32, #tpu.memory_space<vmem>>, vector<1x8x32xf32>,
    return
  }
  func.func @transform_0(%arg0: i32, %arg1: i32) -> (i32, i32, i32) {
    %c0_i32 = arith.constant 0 : i32
    %c0_i32_0 = arith.constant 0 : i32
    return %arg0, %arg1, %c0_i32 : i32, i32, i32
  }
  func.func @transform_1(%arg0: i32, %arg1: i32) -> (i32, i32, i32) {
    %c0_i32 = arith.constant 0 : i32
    %c0_i32_0 = arith.constant 0 : i32
    %c0_i32_1 = arith.constant 0 : i32
    return %arg0, %c0_i32, %c0_i32_0 : i32, i32, i32
  }
  func.func @transform_2(%arg0: i32, %arg1: i32) -> (i32, i32) {
    %c0_i32 = arith.constant 0 : i32
    %c0_i32_0 = arith.constant 0 : i32
    %c0_i32_1 = arith.constant 0 : i32
    return %c0_i32, %c0_i32_0 : i32, i32
  }
  func.func @transform_3(%arg0: i32, %arg1: i32) -> (i32, i32) {
    %c0_i32 = arith.constant 0 : i32
    %c0_i32_0 = arith.constant 0 : i32
    %c0_i32_1 = arith.constant 0 : i32
    return %c0_i32, %c0_i32_0 : i32, i32
  }
  func.func @transform_4(%arg0: i32, %arg1: i32) -> (i32, i32) {
    %c0_i32 = arith.constant 0 : i32
    %c0_i32_0 = arith.constant 0 : i32
    %c0_i32_1 = arith.constant 0 : i32
    return %c0_i32, %c0_i32_0 : i32, i32
  }
  func.func @transform_5(%arg0: i32, %arg1: i32) -> (i32, i32) {
    %c0_i32 = arith.constant 0 : i32
    %c0_i32_0 = arith.constant 0 : i32
    %c0_i32_1 = arith.constant 0 : i32
    return %c0_i32, %c0_i32_0 : i32, i32
  }
  func.func @transform_6(%arg0: i32, %arg1: i32) -> (i32, i32) {
    %c0_i32 = arith.constant 0 : i32
    %c0_i32_0 = arith.constant 0 : i32
    %c0_i32_1 = arith.constant 0 : i32
    return %c0_i32, %c0_i32_0 : i32, i32
  }
  func.func @transform_7(%arg0: i32, %arg1: i32) -> (i32, i32) {
    %c0_i32 = arith.constant 0 : i32
    %c0_i32_0 = arith.constant 0 : i32
    %c0_i32_1 = arith.constant 0 : i32
    return %c0_i32, %c0_i32_0 : i32, i32
  }
  func.func @transform_8(%arg0: i32, %arg1: i32) -> (i32, i32) {
    %c0_i32 = arith.constant 0 : i32
    %c0_i32_0 = arith.constant 0 : i32
    %c0_i32_1 = arith.constant 0 : i32
    return %c0_i32, %c0_i32_0 : i32, i32
  }
  func.func @transform_9(%arg0: i32, %arg1: i32) -> (i32, i32) {
    %c0_i32 = arith.constant 0 : i32
    %c0_i32_0 = arith.constant 0 : i32
    %c0_i32_1 = arith.constant 0 : i32
    return %c0_i32, %c0_i32_0 : i32, i32
  }
  func.func @transform_10(%arg0: i32, %arg1: i32) -> (i32, i32) {
    %c0_i32 = arith.constant 0 : i32
    %c0_i32_0 = arith.constant 0 : i32
    %c0_i32_1 = arith.constant 0 : i32
    return %c0_i32, %c0_i32_0 : i32, i32
  }
  func.func @transform_11(%arg0: i32, %arg1: i32) -> (i32, i32) {
    %c0_i32 = arith.constant 0 : i32
    %c0_i32_0 = arith.constant 0 : i32
    %c0_i32_1 = arith.constant 0 : i32
    return %c0_i32, %c0_i32_0 : i32, i32
  }
  func.func @transform_12(%arg0: i32, %arg1: i32) -> (i32, i32) {
    %c0_i32 = arith.constant 0 : i32
    %c0_i32_0 = arith.constant 0 : i32
    %c0_i32_1 = arith.constant 0 : i32
    return %c0_i32, %c0_i32_0 : i32, i32
  }
  func.func @transform_13(%arg0: i32, %arg1: i32) -> (i32, i32) {
    %c0_i32 = arith.constant 0 : i32
    %c0_i32_0 = arith.constant 0 : i32
    %c0_i32_1 = arith.constant 0 : i32
    return %c0_i32, %c0_i32_0 : i32, i32
  }
  func.func @transform_14(%arg0: i32, %arg1: i32) -> (i32, i32) {
    %c0_i32 = arith.constant 0 : i32
    %c0_i32_0 = arith.constant 0 : i32
    %c0_i32_1 = arith.constant 0 : i32
    return %c0_i32, %c0_i32_0 : i32, i32
  }
  func.func @transform_15(%arg0: i32, %arg1: i32) -> (i32, i32) {
    %c0_i32 = arith.constant 0 : i32
    %c0_i32_0 = arith.constant 0 : i32
    %c0_i32_1 = arith.constant 0 : i32
    return %c0_i32, %c0_i32_0 : i32, i32
  }
  func.func @transform_16(%arg0: i32, %arg1: i32) -> (i32, i32, i32) {
    %c0_i32 = arith.constant 0 : i32
    %c0_i32_0 = arith.constant 0 : i32
    return %arg0, %arg1, %c0_i32 : i32, i32, i32
  }
}

</mosaic_0001>

<llo_original>
// kernel: tpu_custom_call.1
$region0: #{tpu_custom_call.1}
  #allocation0 [shape = 'u32[]', space=smem, size = 0x4, offset = 0x4, fixed_abs, tag = 'smem constant byte address 0x4 - core index']
  #allocation1 [shape = 'u32[72,128]{1,0:T(1,128)}', space=vmem, size = 0x9000, scoped, tag = 'internal scratch']
  %s0 = inlined_call_operand.vmem [shape: f32[2,8,32], index: 0, kind: input, shape index: {}]
  %s1 = inlined_call_operand.vmem [shape: f32[2,8,32], index: 1, kind: input, shape index: {}]
  %s2 = inlined_call_operand.vmem [shape: bf16[32,32], index: 2, kind: input, shape index: {}]
  %s3 = inlined_call_operand.vmem [shape: f32[1,32], index: 3, kind: input, shape index: {}]
  %s4 = inlined_call_operand.hbm [shape: bf16[32,64], index: 4, kind: input, shape index: {}]
  %s5 = inlined_call_operand.vmem [shape: f32[1,64], index: 5, kind: input, shape index: {}]
  %s6 = inlined_call_operand.hbm [shape: bf16[32,32], index: 6, kind: input, shape index: {}]
  %s7 = inlined_call_operand.vmem [shape: f32[1,32], index: 7, kind: input, shape index: {}]
  %s8 = inlined_call_operand.vmem [shape: f32[1,32], index: 8, kind: input, shape index: {}]
  %s9 = inlined_call_operand.vmem [shape: f32[1,32], index: 9, kind: input, shape index: {}]
  %s10 = inlined_call_operand.hbm [shape: bf16[32,64], index: 10, kind: input, shape index: {}]
  %s11 = inlined_call_operand.vmem [shape: f32[1,64], index: 11, kind: input, shape index: {}]
  %s12 = inlined_call_operand.vmem [shape: bf16[64,32], index: 12, kind: input, shape index: {}]
  %s13 = inlined_call_operand.vmem [shape: f32[1,32], index: 13, kind: input, shape index: {}]
  %s14 = inlined_call_operand.vmem [shape: f32[1,32], index: 14, kind: input, shape index: {}]
  %s15 = inlined_call_operand.vmem [shape: f32[1,32], index: 15, kind: input, shape index: {}]
  %s16 = inlined_call_operand.hbm [shape: f32[2,8,32], index: 16, kind: output, shape index: {}]
  %s17 = sld [smem:[#allocation0]]
  $region109: #{tpu_custom_call.1} parent=0
    _
  %s19 = ssub.s32 1, %s17
  %s20 = scalar_select 0, %s19, %s17
  $region1: #{tpu_custom_call.1} parent=0
    #allocation2 [shape = 'u8[8192]{0}', space=vmem, size = 0x2000, scoped, tag = 'input window, operand 4, single buffered']
    #allocation3 [shape = 's32[2]{0}', space=sflag, size = 0x8, scoped, tag = 'scoped memory for tpu_custom_call.1']
    #allocation4 [shape = 's32[2]{0}', space=sflag, size = 0x8, scoped, tag = 'scoped memory for tpu_custom_call.1']
    #allocation5 [shape = 'u8[8192]{0}', space=vmem, size = 0x2000, scoped, tag = 'input window, operand 6, single buffered']
    #allocation6 [shape = 's32[1]{0}', space=sflag, size = 0x4, scoped, tag = 'scoped memory for tpu_custom_call.1']
    #allocation7 [shape = 'u8[8192]{0}', space=vmem, size = 0x2000, scoped, tag = 'input window, operand 10, single buffered']
    #allocation8 [shape = 'u8[8192]{0}', space=vmem, size = 0x2000, scoped, tag = 'output window, operand 0']
    %21 = vsyncpa [#allocation3], 0
    %22 = vsyncpa [#allocation6], 0
    %23 = vsyncpa [#allocation4], 0
    %s24 = scalar_lea.sflag [#allocation4], 1
    %25 = vsyncpa %s24, 0
    loop: start=0, step=1, limit=4
    $region2: #{tpu_custom_call.1} parent=1 // loop_pre_header
      _
    $region3: #{tpu_custom_call.1} parent=1 // loop_header
      %s27 = sphi 0, %s31
      %p28 = scmp.ge.s32.totalorder %s27, 4
      %s34 = sphi 0, %s46
      %s35 = sphi 0, %s42
      %s36 = sphi 0, %s34
      %s37 = sphi 0, %s35
      %s38 = sphi 0, %s36
      %s39 = sphi 0, %s37
      %s51 = sphi 0, %s53
      %s54 = sphi 0, %s51
      %s55 = sphi 0, %s54
      %s71 = sphi 0, %s55
      %s77 = sphi 0, %s79
      %s80 = sphi 0, %s77
      %s81 = sphi 0, %s80
      %s97 = sphi 0, %s81
      %s101 = sphi 0, %s101
      %s103 = sphi 0, %s101
      %s104 = sphi 0, %s103
      %s118 = sphi 0, %s104
      %s122 = sphi 0, %s122
      %s124 = sphi 0, %s122
      %s125 = sphi 0, %s124
      %s139 = sphi 0, %s125
      %s143 = sphi 0, %s143
      %s145 = sphi 0, %s143
      %s146 = sphi 0, %s145
      %s160 = sphi 0, %s146
      %s164 = sphi 0, %s164
      %s166 = sphi 0, %s164
      %s167 = sphi 0, %s166
      %s181 = sphi 0, %s167
      %s185 = sphi 0, %s185
      %s187 = sphi 0, %s185
      %s188 = sphi 0, %s187
      %s202 = sphi 0, %s188
      %s206 = sphi 0, %s206
      %s208 = sphi 0, %s206
      %s209 = sphi 0, %s208
      %s223 = sphi 0, %s209
      %s227 = sphi 0, %s227
      %s229 = sphi 0, %s227
      %s230 = sphi 0, %s229
      %s244 = sphi 0, %s230
      %s248 = sphi 0, %s248
      %s250 = sphi 0, %s248
      %s251 = sphi 0, %s250
      %s265 = sphi 0, %s251
      %s269 = sphi 0, %s269
      %s271 = sphi 0, %s269
      %s272 = sphi 0, %s271
      %s286 = sphi 0, %s272
      %s290 = sphi 0, %s290
      %s292 = sphi 0, %s290
      %s293 = sphi 0, %s292
      %s307 = sphi 0, %s293
      %s311 = sphi 0, %s311
      %s313 = sphi 0, %s311
      %s314 = sphi 0, %s313
      %s328 = sphi 0, %s314
      %s332 = sphi 0, %s332
      %s334 = sphi 0, %s332
      %s335 = sphi 0, %s334
      %s349 = sphi 0, %s335
      %s353 = sphi 0, %s353
      %s355 = sphi 0, %s353
      %s356 = sphi 0, %s355
      %s370 = sphi 0, %s356
      %s374 = sphi 0, %s374
      %s376 = sphi 0, %s374
      %s377 = sphi 0, %s376
      %s391 = sphi 0, %s377
      %s399 = sphi 0, %s401
      %s402 = sphi 0, %s399
      %s403 = sphi 0, %s402
      %s419 = sphi 0, %s403
    $region4: #{tpu_custom_call.1} parent=1 // loop_header_branch
      %30 = sbr.rel (%p28) target = $region8
    $region5: #{tpu_custom_call.1} parent=1 // loop_body
      %s32 = ssub.s32 %s27, 1
      %s33 = ssub.s32 %s27, 2
      %s40 = sadd.s32 1, %s35
      %p41 = scmp.ge.s32.totalorder %s40, 1
      %s42 = scalar_select %p41, 0, %s40
      %s43 = sadd.s32 1, %s34
      %s44 = scalar_select %p41, %s43, %s34
      %p45 = scmp.ge.s32.totalorder %s44, 2
      %s46 = scalar_select %p45, 0, %s44
      %s47 = ssub.s32 %s34, %s46
      %s48 = ssub.s32 %s35, %s42
      %s49 = sor.u32 %s47, %s48
      %p50 = scmp.eq.s32.totalorder %s49, 0
      %s52 = sadd.s32 %s51, 1
      %s53 = scalar_select %p50, %s51, %s52
      %p56 = pneg %p50
      %p57 = scmp.eq.s32.totalorder %s27, 1
      %p58 = por %p56, %p57
      %p59 = scmp.ne.s32.totalorder %s51, %s54
      %p60 = scmp.eq.s32.totalorder %s27, 0
      %p61 = por %p59, %p60
      %p62 = scmp.ne.s32.totalorder %s51, %s54
      %p63 = scmp.eq.s32.totalorder %s32, 1
      %p64 = por %p62, %p63
      %p65 = scmp.ne.s32.totalorder %s54, %s55
      %p66 = scmp.eq.s32.totalorder %s32, 0
      %p67 = por %p65, %p66
      %p68 = scmp.ne.s32.totalorder %s54, %s55
      %p69 = scmp.eq.s32.totalorder %s33, 1
      %p70 = por %p68, %p69
      %p72 = scmp.ne.s32.totalorder %s55, %s71
      %p73 = scmp.eq.s32.totalorder %s33, 0
      %p74 = por %p72, %p73
      %s75 = ssub.s32 %s34, %s46
      %p76 = scmp.eq.s32.totalorder %s75, 0
      %s78 = sadd.s32 %s77, 1
      %s79 = scalar_select %p76, %s77, %s78
      %p82 = pneg %p76
      %p83 = scmp.eq.s32.totalorder %s27, 1
      %p84 = por %p82, %p83
      %p85 = scmp.ne.s32.totalorder %s77, %s80
      %p86 = scmp.eq.s32.totalorder %s27, 0
      %p87 = por %p85, %p86
      %p88 = scmp.ne.s32.totalorder %s77, %s80
      %p89 = scmp.eq.s32.totalorder %s32, 1
      %p90 = por %p88, %p89
      %p91 = scmp.ne.s32.totalorder %s80, %s81
      %p92 = scmp.eq.s32.totalorder %s32, 0
      %p93 = por %p91, %p92
      %p94 = scmp.ne.s32.totalorder %s80, %s81
      %p95 = scmp.eq.s32.totalorder %s33, 1
      %p96 = por %p94, %p95
      %p98 = scmp.ne.s32.totalorder %s81, %s97
      %p99 = scmp.eq.s32.totalorder %s33, 0
      %p100 = por %p98, %p99
      %s102 = sadd.s32 %s101, 1
      %p105 = scmp.eq.s32.totalorder %s27, 1
      %p106 = scmp.ne.s32.totalorder %s101, %s103
      %p107 = scmp.eq.s32.totalorder %s27, 0
      %p108 = por %p106, %p107
      %p109 = scmp.ne.s32.totalorder %s101, %s103
      %p110 = scmp.eq.s32.totalorder %s32, 1
      %p111 = por %p109, %p110
      %p112 = scmp.ne.s32.totalorder %s103, %s104
      %p113 = scmp.eq.s32.totalorder %s32, 0
      %p114 = por %p112, %p113
      %p115 = scmp.ne.s32.totalorder %s103, %s104
      %p116 = scmp.eq.s32.totalorder %s33, 1
      %p117 = por %p115, %p116
      %p119 = scmp.ne.s32.totalorder %s104, %s118
      %p120 = scmp.eq.s32.totalorder %s33, 0
      %p121 = por %p119, %p120
      %s123 = sadd.s32 %s122, 1
      %p126 = scmp.eq.s32.totalorder %s27, 1
      %p127 = scmp.ne.s32.totalorder %s122, %s124
      %p128 = scmp.eq.s32.totalorder %s27, 0
      %p129 = por %p127, %p128
      %p130 = scmp.ne.s32.totalorder %s122, %s124
      %p131 = scmp.eq.s32.totalorder %s32, 1
      %p132 = por %p130, %p131
      %p133 = scmp.ne.s32.totalorder %s124, %s125
      %p134 = scmp.eq.s32.totalorder %s32, 0
      %p135 = por %p133, %p134
      %p136 = scmp.ne.s32.totalorder %s124, %s125
      %p137 = scmp.eq.s32.totalorder %s33, 1
      %p138 = por %p136, %p137
      %p140 = scmp.ne.s32.totalorder %s125, %s139
      %p141 = scmp.eq.s32.totalorder %s33, 0
      %p142 = por %p140, %p141
      %s144 = sadd.s32 %s143, 1
      %p147 = scmp.eq.s32.totalorder %s27, 1
      %p148 = scmp.ne.s32.totalorder %s143, %s145
      %p149 = scmp.eq.s32.totalorder %s27, 0
      %p150 = por %p148, %p149
      %p151 = scmp.ne.s32.totalorder %s143, %s145
      %p152 = scmp.eq.s32.totalorder %s32, 1
      %p153 = por %p151, %p152
      %p154 = scmp.ne.s32.totalorder %s145, %s146
      %p155 = scmp.eq.s32.totalorder %s32, 0
      %p156 = por %p154, %p155
      %p157 = scmp.ne.s32.totalorder %s145, %s146
      %p158 = scmp.eq.s32.totalorder %s33, 1
      %p159 = por %p157, %p158
      %p161 = scmp.ne.s32.totalorder %s146, %s160
      %p162 = scmp.eq.s32.totalorder %s33, 0
      %p163 = por %p161, %p162
      %s165 = sadd.s32 %s164, 1
      %p168 = scmp.eq.s32.totalorder %s27, 1
      %p169 = scmp.ne.s32.totalorder %s164, %s166
      %p170 = scmp.eq.s32.totalorder %s27, 0
      %p171 = por %p169, %p170
      %p172 = scmp.ne.s32.totalorder %s164, %s166
      %p173 = scmp.eq.s32.totalorder %s32, 1
      %p174 = por %p172, %p173
      %p175 = scmp.ne.s32.totalorder %s166, %s167
      %p176 = scmp.eq.s32.totalorder %s32, 0
      %p177 = por %p175, %p176
      %p178 = scmp.ne.s32.totalorder %s166, %s167
      %p179 = scmp.eq.s32.totalorder %s33, 1
      %p180 = por %p178, %p179
      %p182 = scmp.ne.s32.totalorder %s167, %s181
      %p183 = scmp.eq.s32.totalorder %s33, 0
      %p184 = por %p182, %p183
      %s186 = sadd.s32 %s185, 1
      %p189 = scmp.eq.s32.totalorder %s27, 1
      %p190 = scmp.ne.s32.totalorder %s185, %s187
      %p191 = scmp.eq.s32.totalorder %s27, 0
      %p192 = por %p190, %p191
      %p193 = scmp.ne.s32.totalorder %s185, %s187
      %p194 = scmp.eq.s32.totalorder %s32, 1
      %p195 = por %p193, %p194
      %p196 = scmp.ne.s32.totalorder %s187, %s188
      %p197 = scmp.eq.s32.totalorder %s32, 0
      %p198 = por %p196, %p197
      %p199 = scmp.ne.s32.totalorder %s187, %s188
      %p200 = scmp.eq.s32.totalorder %s33, 1
      %p201 = por %p199, %p200
      %p203 = scmp.ne.s32.totalorder %s188, %s202
      %p204 = scmp.eq.s32.totalorder %s33, 0
      %p205 = por %p203, %p204
      %s207 = sadd.s32 %s206, 1
      %p210 = scmp.eq.s32.totalorder %s27, 1
      %p211 = scmp.ne.s32.totalorder %s206, %s208
      %p212 = scmp.eq.s32.totalorder %s27, 0
      %p213 = por %p211, %p212
      %p214 = scmp.ne.s32.totalorder %s206, %s208
      %p215 = scmp.eq.s32.totalorder %s32, 1
      %p216 = por %p214, %p215
      %p217 = scmp.ne.s32.totalorder %s208, %s209
      %p218 = scmp.eq.s32.totalorder %s32, 0
      %p219 = por %p217, %p218
      %p220 = scmp.ne.s32.totalorder %s208, %s209
      %p221 = scmp.eq.s32.totalorder %s33, 1
      %p222 = por %p220, %p221
      %p224 = scmp.ne.s32.totalorder %s209, %s223
      %p225 = scmp.eq.s32.totalorder %s33, 0
      %p226 = por %p224, %p225
      %s228 = sadd.s32 %s227, 1
      %p231 = scmp.eq.s32.totalorder %s27, 1
      %p232 = scmp.ne.s32.totalorder %s227, %s229
      %p233 = scmp.eq.s32.totalorder %s27, 0
      %p234 = por %p232, %p233
      %p235 = scmp.ne.s32.totalorder %s227, %s229
      %p236 = scmp.eq.s32.totalorder %s32, 1
      %p237 = por %p235, %p236
      %p238 = scmp.ne.s32.totalorder %s229, %s230
      %p239 = scmp.eq.s32.totalorder %s32, 0
      %p240 = por %p238, %p239
      %p241 = scmp.ne.s32.totalorder %s229, %s230
      %p242 = scmp.eq.s32.totalorder %s33, 1
      %p243 = por %p241, %p242
      %p245 = scmp.ne.s32.totalorder %s230, %s244
      %p246 = scmp.eq.s32.totalorder %s33, 0
      %p247 = por %p245, %p246
      %s249 = sadd.s32 %s248, 1
      %p252 = scmp.eq.s32.totalorder %s27, 1
      %p253 = scmp.ne.s32.totalorder %s248, %s250
      %p254 = scmp.eq.s32.totalorder %s27, 0
      %p255 = por %p253, %p254
      %p256 = scmp.ne.s32.totalorder %s248, %s250
      %p257 = scmp.eq.s32.totalorder %s32, 1
      %p258 = por %p256, %p257
      %p259 = scmp.ne.s32.totalorder %s250, %s251
      %p260 = scmp.eq.s32.totalorder %s32, 0
      %p261 = por %p259, %p260
      %p262 = scmp.ne.s32.totalorder %s250, %s251
      %p263 = scmp.eq.s32.totalorder %s33, 1
      %p264 = por %p262, %p263
      %p266 = scmp.ne.s32.totalorder %s251, %s265
      %p267 = scmp.eq.s32.totalorder %s33, 0
      %p268 = por %p266, %p267
      %s270 = sadd.s32 %s269, 1
      %p273 = scmp.eq.s32.totalorder %s27, 1
      %p274 = scmp.ne.s32.totalorder %s269, %s271
      %p275 = scmp.eq.s32.totalorder %s27, 0
      %p276 = por %p274, %p275
      %p277 = scmp.ne.s32.totalorder %s269, %s271
      %p278 = scmp.eq.s32.totalorder %s32, 1
      %p279 = por %p277, %p278
      %p280 = scmp.ne.s32.totalorder %s271, %s272
      %p281 = scmp.eq.s32.totalorder %s32, 0
      %p282 = por %p280, %p281
      %p283 = scmp.ne.s32.totalorder %s271, %s272
      %p284 = scmp.eq.s32.totalorder %s33, 1
      %p285 = por %p283, %p284
      %p287 = scmp.ne.s32.totalorder %s272, %s286
      %p288 = scmp.eq.s32.totalorder %s33, 0
      %p289 = por %p287, %p288
      %s291 = sadd.s32 %s290, 1
      %p294 = scmp.eq.s32.totalorder %s27, 1
      %p295 = scmp.ne.s32.totalorder %s290, %s292
      %p296 = scmp.eq.s32.totalorder %s27, 0
      %p297 = por %p295, %p296
      %p298 = scmp.ne.s32.totalorder %s290, %s292
      %p299 = scmp.eq.s32.totalorder %s32, 1
      %p300 = por %p298, %p299
      %p301 = scmp.ne.s32.totalorder %s292, %s293
      %p302 = scmp.eq.s32.totalorder %s32, 0
      %p303 = por %p301, %p302
      %p304 = scmp.ne.s32.totalorder %s292, %s293
      %p305 = scmp.eq.s32.totalorder %s33, 1
      %p306 = por %p304, %p305
      %p308 = scmp.ne.s32.totalorder %s293, %s307
      %p309 = scmp.eq.s32.totalorder %s33, 0
      %p310 = por %p308, %p309
      %s312 = sadd.s32 %s311, 1
      %p315 = scmp.eq.s32.totalorder %s27, 1
      %p316 = scmp.ne.s32.totalorder %s311, %s313
      %p317 = scmp.eq.s32.totalorder %s27, 0
      %p318 = por %p316, %p317
      %p319 = scmp.ne.s32.totalorder %s311, %s313
      %p320 = scmp.eq.s32.totalorder %s32, 1
      %p321 = por %p319, %p320
      %p322 = scmp.ne.s32.totalorder %s313, %s314
      %p323 = scmp.eq.s32.totalorder %s32, 0
      %p324 = por %p322, %p323
      %p325 = scmp.ne.s32.totalorder %s313, %s314
      %p326 = scmp.eq.s32.totalorder %s33, 1
      %p327 = por %p325, %p326
      %p329 = scmp.ne.s32.totalorder %s314, %s328
      %p330 = scmp.eq.s32.totalorder %s33, 0
      %p331 = por %p329, %p330
      %s333 = sadd.s32 %s332, 1
      %p336 = scmp.eq.s32.totalorder %s27, 1
      %p337 = scmp.ne.s32.totalorder %s332, %s334
      %p338 = scmp.eq.s32.totalorder %s27, 0
      %p339 = por %p337, %p338
      %p340 = scmp.ne.s32.totalorder %s332, %s334
      %p341 = scmp.eq.s32.totalorder %s32, 1
      %p342 = por %p340, %p341
      %p343 = scmp.ne.s32.totalorder %s334, %s335
      %p344 = scmp.eq.s32.totalorder %s32, 0
      %p345 = por %p343, %p344
      %p346 = scmp.ne.s32.totalorder %s334, %s335
      %p347 = scmp.eq.s32.totalorder %s33, 1
      %p348 = por %p346, %p347
      %p350 = scmp.ne.s32.totalorder %s335, %s349
      %p351 = scmp.eq.s32.totalorder %s33, 0
      %p352 = por %p350, %p351
      %s354 = sadd.s32 %s353, 1
      %p357 = scmp.eq.s32.totalorder %s27, 1
      %p358 = scmp.ne.s32.totalorder %s353, %s355
      %p359 = scmp.eq.s32.totalorder %s27, 0
      %p360 = por %p358, %p359
      %p361 = scmp.ne.s32.totalorder %s353, %s355
      %p362 = scmp.eq.s32.totalorder %s32, 1
      %p363 = por %p361, %p362
      %p364 = scmp.ne.s32.totalorder %s355, %s356
      %p365 = scmp.eq.s32.totalorder %s32, 0
      %p366 = por %p364, %p365
      %p367 = scmp.ne.s32.totalorder %s355, %s356
      %p368 = scmp.eq.s32.totalorder %s33, 1
      %p369 = por %p367, %p368
      %p371 = scmp.ne.s32.totalorder %s356, %s370
      %p372 = scmp.eq.s32.totalorder %s33, 0
      %p373 = por %p371, %p372
      %s375 = sadd.s32 %s374, 1
      %p378 = scmp.eq.s32.totalorder %s27, 1
      %p379 = scmp.ne.s32.totalorder %s374, %s376
      %p380 = scmp.eq.s32.totalorder %s27, 0
      %p381 = por %p379, %p380
      %p382 = scmp.ne.s32.totalorder %s374, %s376
      %p383 = scmp.eq.s32.totalorder %s32, 1
      %p384 = por %p382, %p383
      %p385 = scmp.ne.s32.totalorder %s376, %s377
      %p386 = scmp.eq.s32.totalorder %s32, 0
      %p387 = por %p385, %p386
      %p388 = scmp.ne.s32.totalorder %s376, %s377
      %p389 = scmp.eq.s32.totalorder %s33, 1
      %p390 = por %p388, %p389
      %p392 = scmp.ne.s32.totalorder %s377, %s391
      %p393 = scmp.eq.s32.totalorder %s33, 0
      %p394 = por %p392, %p393
      %s395 = ssub.s32 %s34, %s46
      %s396 = ssub.s32 %s35, %s42
      %s397 = sor.u32 %s395, %s396
      %p398 = scmp.eq.s32.totalorder %s397, 0
      %s400 = sadd.s32 %s399, 1
      %s401 = scalar_select %p398, %s399, %s400
      %p404 = pneg %p398
      %p405 = scmp.eq.s32.totalorder %s27, 1
      %p406 = por %p404, %p405
      %p407 = scmp.ne.s32.totalorder %s399, %s402
      %p408 = scmp.eq.s32.totalorder %s27, 0
      %p409 = por %p407, %p408
      %p410 = scmp.ne.s32.totalorder %s399, %s402
      %p411 = scmp.eq.s32.totalorder %s32, 1
      %p412 = por %p410, %p411
      %p413 = scmp.ne.s32.totalorder %s402, %s403
      %p414 = scmp.eq.s32.totalorder %s32, 0
      %p415 = por %p413, %p414
      %p416 = scmp.ne.s32.totalorder %s402, %s403
      %p417 = scmp.eq.s32.totalorder %s33, 1
      %p418 = por %p416, %p417
      %p420 = scmp.ne.s32.totalorder %s403, %s419
      %p421 = scmp.eq.s32.totalorder %s33, 0
      %p422 = por %p420, %p421
      %p423 = scmp.le.s32.totalorder 1, %s27
      %p424 = scmp.lt.s32.totalorder %s27, 3
      %p425 = pnand %p423, %p424
      %p426 = pneg %p425
      // Predicated region
      $region9: #{tpu_custom_call.1} parent=5 // pred_check
        _
      $region10: #{tpu_custom_call.1} parent=5 // pred_check_branch
        %428 = sbr.rel (%p425) target = $region12
      $region11: #{tpu_custom_call.1} parent=5 // pred_region
        %s429 = ssub.s32 %s27, 1
        // Predicated region
        $region13: #{tpu_custom_call.1} parent=11 // pred_check
          %p430 = pneg %p114
        $region14: #{tpu_custom_call.1} parent=11 // pred_check_branch
          %432 = sbr.rel (%p430) target = $region16
        $region15: #{tpu_custom_call.1} parent=11 // pred_region
          _
        $region16: #{tpu_custom_call.1} parent=11 // pred_fallthru
          _
        // Predicated region
        $region17: #{tpu_custom_call.1} parent=11 // pred_check
          %p433 = pneg %p135
        $region18: #{tpu_custom_call.1} parent=11 // pred_check_branch
          %435 = sbr.rel (%p433) target = $region20
        $region19: #{tpu_custom_call.1} parent=11 // pred_region
          _
        $region20: #{tpu_custom_call.1} parent=11 // pred_fallthru
          _
        // Predicated region
        $region21: #{tpu_custom_call.1} parent=11 // pred_check
          %p436 = pneg %p156
        $region22: #{tpu_custom_call.1} parent=11 // pred_check_branch
          %438 = sbr.rel (%p436) target = $region24
        $region23: #{tpu_custom_call.1} parent=11 // pred_region
          %440 = vsyncadd [#allocation3], 0
          %s441 = sshll.u32 %s4, 4
          %s442 = int_to_ptr.hbm [resolvable:$true] %s441
          %s443 = sshll.u32 [#allocation2], 4
          %s444 = int_to_ptr.vmem [resolvable:$true] %s443
          %449 = dma.hbm_to_vmem [thread:$0]  %s442, 256, %s444, [#allocation3], 64, 64, 4
        $region24: #{tpu_custom_call.1} parent=11 // pred_fallthru
          _
        // Predicated region
        $region25: #{tpu_custom_call.1} parent=11 // pred_check
          %p450 = pneg %p177
        $region26: #{tpu_custom_call.1} parent=11 // pred_check_branch
          %452 = sbr.rel (%p450) target = $region28
        $region27: #{tpu_custom_call.1} parent=11 // pred_region
          _
        $region28: #{tpu_custom_call.1} parent=11 // pred_fallthru
          _
        // Predicated region
        $region29: #{tpu_custom_call.1} parent=11 // pred_check
          %p453 = pneg %p198
        $region30: #{tpu_custom_call.1} parent=11 // pred_check_branch
          %455 = sbr.rel (%p453) target = $region32
        $region31: #{tpu_custom_call.1} parent=11 // pred_region
          %457 = vsyncadd [#allocation6], 0
          %s458 = sshll.u32 %s6, 4
          %s459 = int_to_ptr.hbm [resolvable:$true] %s458
          %s460 = sshll.u32 [#allocation5], 4
          %s461 = int_to_ptr.vmem [resolvable:$true] %s460
          %466 = dma.hbm_to_vmem [thread:$0]  %s459, 256, %s461, [#allocation6], 64, 64, 4
        $region32: #{tpu_custom_call.1} parent=11 // pred_fallthru
          _
        // Predicated region
        $region33: #{tpu_custom_call.1} parent=11 // pred_check
          %p467 = pneg %p219
        $region34: #{tpu_custom_call.1} parent=11 // pred_check_branch
          %469 = sbr.rel (%p467) target = $region36
        $region35: #{tpu_custom_call.1} parent=11 // pred_region
          _
        $region36: #{tpu_custom_call.1} parent=11 // pred_fallthru
          _
        // Predicated region
        $region37: #{tpu_custom_call.1} parent=11 // pred_check
          %p470 = pneg %p240
        $region38: #{tpu_custom_call.1} parent=11 // pred_check_branch
          %472 = sbr.rel (%p470) target = $region40
        $region39: #{tpu_custom_call.1} parent=11 // pred_region
          _
        $region40: #{tpu_custom_call.1} parent=11 // pred_fallthru
          _
        // Predicated region
        $region41: #{tpu_custom_call.1} parent=11 // pred_check
          %p473 = pneg %p261
        $region42: #{tpu_custom_call.1} parent=11 // pred_check_branch
          %475 = sbr.rel (%p473) target = $region44
        $region43: #{tpu_custom_call.1} parent=11 // pred_region
          _
        $region44: #{tpu_custom_call.1} parent=11 // pred_fallthru
          _
        // Predicated region
        $region45: #{tpu_custom_call.1} parent=11 // pred_check
          %p476 = pneg %p282
        $region46: #{tpu_custom_call.1} parent=11 // pred_check_branch
          %478 = sbr.rel (%p476) target = $region48
        $region47: #{tpu_custom_call.1} parent=11 // pred_region
          %480 = vsyncadd [#allocation6], 0
          %s481 = sshll.u32 %s10, 4
          %s482 = int_to_ptr.hbm [resolvable:$true] %s481
          %s483 = sshll.u32 [#allocation7], 4
          %s484 = int_to_ptr.vmem [resolvable:$true] %s483
          %489 = dma.hbm_to_vmem [thread:$0]  %s482, 256, %s484, [#allocation6], 64, 64, 4
        $region48: #{tpu_custom_call.1} parent=11 // pred_fallthru
          _
        // Predicated region
        $region49: #{tpu_custom_call.1} parent=11 // pred_check
          %p490 = pneg %p303
        $region50: #{tpu_custom_call.1} parent=11 // pred_check_branch
          %492 = sbr.rel (%p490) target = $region52
        $region51: #{tpu_custom_call.1} parent=11 // pred_region
          _
        $region52: #{tpu_custom_call.1} parent=11 // pred_fallthru
          _
        // Predicated region
        $region53: #{tpu_custom_call.1} parent=11 // pred_check
          %p493 = pneg %p324
        $region54: #{tpu_custom_call.1} parent=11 // pred_check_branch
          %495 = sbr.rel (%p493) target = $region56
        $region55: #{tpu_custom_call.1} parent=11 // pred_region
          _
        $region56: #{tpu_custom_call.1} parent=11 // pred_fallthru
          _
        // Predicated region
        $region57: #{tpu_custom_call.1} parent=11 // pred_check
          %p496 = pneg %p345
        $region58: #{tpu_custom_call.1} parent=11 // pred_check_branch
          %498 = sbr.rel (%p496) target = $region60
        $region59: #{tpu_custom_call.1} parent=11 // pred_region
          _
        $region60: #{tpu_custom_call.1} parent=11 // pred_fallthru
          _
        // Predicated region
        $region61: #{tpu_custom_call.1} parent=11 // pred_check
          %p499 = pneg %p366
        $region62: #{tpu_custom_call.1} parent=11 // pred_check_branch
          %501 = sbr.rel (%p499) target = $region64
        $region63: #{tpu_custom_call.1} parent=11 // pred_region
          _
        $region64: #{tpu_custom_call.1} parent=11 // pred_fallthru
          _
        // Predicated region
        $region65: #{tpu_custom_call.1} parent=11 // pred_check
          %p502 = pneg %p387
        $region66: #{tpu_custom_call.1} parent=11 // pred_check_branch
          %504 = sbr.rel (%p502) target = $region68
        $region67: #{tpu_custom_call.1} parent=11 // pred_region
          _
        $region68: #{tpu_custom_call.1} parent=11 // pred_fallthru
          _
      $region12: #{tpu_custom_call.1} parent=5 // pred_fallthru
        _
      %p505 = scmp.lt.s32.totalorder %s27, 2
      // Predicated region
      $region69: #{tpu_custom_call.1} parent=5 // pred_check
        %p506 = pneg %p505
      $region70: #{tpu_custom_call.1} parent=5 // pred_check_branch
        %508 = sbr.rel (%p506) target = $region72
      $region71: #{tpu_custom_call.1} parent=5 // pred_region
        // Predicated region
        $region73: #{tpu_custom_call.1} parent=71 // pred_check
          %p509 = pneg %p61
        $region74: #{tpu_custom_call.1} parent=71 // pred_check_branch
          %511 = sbr.rel (%p509) target = $region76
        $region75: #{tpu_custom_call.1} parent=71 // pred_region
          %p512 = scmp.lt.s32.totalorder %s34, 1
          %s513 = scalar_select %p512, %s34, 1
          %p514 = scmp.lt.s32.totalorder %s35, 0
          %s515 = scalar_select %p514, %s35, 0
          %s516 = sadd.s32 %s515, %s513
          %s517 = smul.addr %s516, 8
          %s518 = scalar_lea.vmem %s0, %s517
        $region76: #{tpu_custom_call.1} parent=71 // pred_fallthru
          _
        // Predicated region
        $region77: #{tpu_custom_call.1} parent=71 // pred_check
          %p519 = pneg %p87
        $region78: #{tpu_custom_call.1} parent=71 // pred_check_branch
          %521 = sbr.rel (%p519) target = $region80
        $region79: #{tpu_custom_call.1} parent=71 // pred_region
          %p522 = scmp.lt.s32.totalorder %s34, 1
          %s523 = scalar_select %p522, %s34, 1
          %s524 = smul.addr %s523, 8
          %s525 = scalar_lea.vmem %s1, %s524
        $region80: #{tpu_custom_call.1} parent=71 // pred_fallthru
          _
      $region72: #{tpu_custom_call.1} parent=5 // pred_fallthru
        _
      %p526 = scmp.le.s32.totalorder 1, %s27
      %p527 = scmp.lt.s32.totalorder %s27, 3
      %p528 = pnand %p526, %p527
      %p529 = pneg %p528
      // Predicated region
      $region81: #{tpu_custom_call.1} parent=5 // pred_check
        _
      $region82: #{tpu_custom_call.1} parent=5 // pred_check_branch
        %531 = sbr.rel (%p528) target = $region84
      $region83: #{tpu_custom_call.1} parent=5 // pred_region
        %s532 = ssub.s32 %s27, 1
        // Predicated region
        $region85: #{tpu_custom_call.1} parent=83 // pred_check
          %p533 = pneg %p156
        $region86: #{tpu_custom_call.1} parent=83 // pred_check_branch
          %535 = sbr.rel (%p533) target = $region88
        $region87: #{tpu_custom_call.1} parent=83 // pred_region
          %537 = dma.done [#allocation3], 256
        $region88: #{tpu_custom_call.1} parent=83 // pred_fallthru
          _
        // Predicated region
        $region89: #{tpu_custom_call.1} parent=83 // pred_check
          %p538 = pneg %p198
        $region90: #{tpu_custom_call.1} parent=83 // pred_check_branch
          %540 = sbr.rel (%p538) target = $region92
        $region91: #{tpu_custom_call.1} parent=83 // pred_region
          %542 = dma.done [#allocation6], 256
        $region92: #{tpu_custom_call.1} parent=83 // pred_fallthru
          _
        // Predicated region
        $region93: #{tpu_custom_call.1} parent=83 // pred_check
          %p543 = pneg %p282
        $region94: #{tpu_custom_call.1} parent=83 // pred_check_branch
          %545 = sbr.rel (%p543) target = $region96
        $region95: #{tpu_custom_call.1} parent=83 // pred_region
          %547 = dma.done [#allocation6], 256
        $region96: #{tpu_custom_call.1} parent=83 // pred_fallthru
          _
        %p548 = scmp.lt.s32.totalorder %s36, 1
        %s549 = scalar_select %p548, %s36, 1
        %p550 = scmp.lt.s32.totalorder %s37, 0
        %s551 = scalar_select %p550, %s37, 0
        %s552 = sadd.s32 %s551, %s549
        %s553 = smul.addr %s552, 8
        %s554 = scalar_lea.vmem %s0, %s553
        %p555 = pneg %p67
        %p556 = pneg %p64
        %p557 = scmp.lt.s32.totalorder %s36, 1
        %s558 = scalar_select %p557, %s36, 1
        %s559 = smul.addr %s558, 8
        %s560 = scalar_lea.vmem %s1, %s559
        %p561 = pneg %p93
        %p562 = pneg %p90
        %p563 = pneg %p114
        %p564 = pneg %p111
        %p565 = pneg %p135
        %p566 = pneg %p132
        %p567 = pneg %p156
        %p568 = pneg %p153
        %p569 = pneg %p177
        %p570 = pneg %p174
        %p571 = pneg %p198
        %p572 = pneg %p195
        %p573 = pneg %p219
        %p574 = pneg %p216
        %p575 = pneg %p240
        %p576 = pneg %p237
        %p577 = pneg %p261
        %p578 = pneg %p258
        %p579 = pneg %p282
        %p580 = pneg %p279
        %p581 = pneg %p303
        %p582 = pneg %p300
        %p583 = pneg %p324
        %p584 = pneg %p321
        %p585 = pneg %p345
        %p586 = pneg %p342
        %p587 = pneg %p366
        %p588 = pneg %p363
        %p589 = pneg %p387
        %p590 = pneg %p384
        %p591 = pneg %p415
        %p592 = pneg %p412
        %s593 = sand.u32 %s402, 1
        %s594 = scalar_lea.sflag [#allocation4], %s593
        %s595 = sand.u32 %s402, 1
        %s596 = smul.addr %s595, 8
        %s597 = scalar_lea.vmem [#allocation8], %s596
        %p598 = scmp.lt.s32.totalorder %s36, 1
        %s599 = scalar_select %p598, %s36, 1
        %p600 = scmp.lt.s32.totalorder %s37, 0
        %s601 = scalar_select %p600, %s37, 0
        %s602 = sadd.s32 %s601, %s599
        %s603 = smul.addr %s602, 8
        %s604 = scalar_lea.vmem %s0, %s603
        %p605 = scmp.lt.s32.totalorder %s36, 1
        %s606 = scalar_select %p605, %s36, 1
        %s607 = smul.addr %s606, 8
        %s608 = scalar_lea.vmem %s1, %s607
        %v610 = vld [vmem:[%s604] sm:$0xff]
        %v611 = vld [vmem:[%s608] sm:$0xff]
        %v612 = vpack.c.bf16 %v610, %v610
        %v613 = vpack.c.bf16 %v611, %v611
        %v614 = vld [vmem:[%s2] sm:$0xf]
        %v615 = vld [vmem:[%s2 + $0x4] sm:$0xf]
        %v616 = vld [vmem:[%s2 + $0x8] sm:$0xf]
        %v617 = vld [vmem:[%s2 + $0xc] sm:$0xf]
        %v618 = vld [vmem:[%s3] sm:$0x1]
        %v620 = vperm.slane %v618, 0
        %v626 = vunpack.c.l.b16 %v614
        %v627 = vunpack.c.l.b16 %v615
        %v628 = vunpack.c.l.b16 %v616
        %v629 = vunpack.c.l.b16 %v617
        %v630 = vpack.c.b16 %v627, %v626
        %v631 = vpack.c.b16 %v629, %v628
        %vm634 = vcmask 261120
        %v636 = vsel %vm634, %v612, 0
        %638 = vmatpush.bf16.msra.mxu0 0
        %639 = vmatpush.bf16.msra.mxu0 0
        %640 = vmatpush.bf16.msra.mxu0 0
        %641 = vmatpush.bf16.msra.mxu0 0
        %642 = vmatpush.bf16.msra.mxu0 0
        %643 = vmatpush.bf16.msra.mxu0 0
        %644 = vmatpush.bf16.msra.mxu0 %v631
        %645 = vmatpush.bf16.msra.mxu0 %v630
        %646 = vmatmul.bf16.gmra.mxu0 %v636
        %v647 = vpop.f32.mrf.mxu0
        %v648 = vadd.f32 %v620, %v647
        %v649 = vpop.f32.mrf.mxu0
        %650 = vdwg.mxu0
        %v651 = vld [vmem:[#allocation2] sm:$0xf]
        %v652 = vld [vmem:[#allocation2 + $0x4] sm:$0xf]
        %v653 = vld [vmem:[#allocation2 + $0x8] sm:$0xf]
        %v654 = vld [vmem:[#allocation2 + $0xc] sm:$0xf]
        %v655 = vld [vmem:[%s5] sm:$0x1]
        %v657 = vperm.slane %v655, 0
        %v663 = vunpack.c.l.b16 %v651
        %v664 = vunpack.c.l.b16 %v652
        %v665 = vunpack.c.l.b16 %v653
        %v666 = vunpack.c.l.b16 %v654
        %v667 = vpack.c.b16 %v664, %v663
        %v668 = vpack.c.b16 %v666, %v665
        %v672 = vsel %vm634, %v613, 0
        %674 = vmatpush.bf16.msra.mxu0 0
        %675 = vmatpush.bf16.msra.mxu0 0
        %676 = vmatpush.bf16.msra.mxu0 0
        %677 = vmatpush.bf16.msra.mxu0 0
        %678 = vmatpush.bf16.msra.mxu0 0
        %679 = vmatpush.bf16.msra.mxu0 0
        %680 = vmatpush.bf16.msra.mxu0 %v668
        %681 = vmatpush.bf16.msra.mxu0 %v667
        %682 = vmatmul.bf16.gmra.mxu0 %v672
        %v683 = vpop.f32.mrf.mxu0
        %v684 = vadd.f32 %v657, %v683
        %v685 = vpop.f32.mrf.mxu0
        %686 = vdwg.mxu0
        %v687 = vmul.f32 %v648, 0.35355338
        %689 = vrot.lane.b32.xlu0 %v687, 120
        %v690 = vpop.permute.xlu0 %689
        %692 = vrot.lane.b32.xlu0 %v687, 112
        %v693 = vpop.permute.xlu0 %692
        %695 = vrot.lane.b32.xlu0 %v687, 104
        %v696 = vpop.permute.xlu0 %695
        %v698 = vpack.c.bf16 %v687, %v687
        %v699 = vpack.c.bf16 %v690, %v690
        %v700 = vpack.c.bf16 %v693, %v693
        %v701 = vpack.c.bf16 %v696, %v696
        %703 = vrot.lane.b32.xlu0 %v684, 120
        %v704 = vpop.permute.xlu0 %703
        %706 = vrot.lane.b32.xlu0 %v684, 112
        %v707 = vpop.permute.xlu0 %706
        %709 = vrot.lane.b32.xlu0 %v684, 104
        %v710 = vpop.permute.xlu0 %709
        %v712 = vpack.c.bf16 %v684, %v684
        %v713 = vpack.c.bf16 %v704, %v704
        %v714 = vpack.c.bf16 %v707, %v707
        %v715 = vpack.c.bf16 %v710, %v710
        %vm716 = vcmask 64512
        %v718 = vsel %vm716, %v698, 0
        %v721 = vsel %vm716, %v712, 0
        %723 = vmatpush.bf16.xpose.msra.mxu0 0
        %724 = vmatpush.bf16.xpose.msra.mxu0 0
        %725 = vmatpush.bf16.xpose.msra.mxu0 0
        %726 = vmatpush.bf16.xpose.msra.mxu0 0
        %727 = vmatpush.bf16.xpose.msra.mxu0 0
        %728 = vmatpush.bf16.xpose.msra.mxu0 0
        %729 = vmatpush.bf16.xpose.msra.mxu0 0
        %730 = vmatpush.bf16.xpose.msra.mxu0 %v721
        %731 = vmatmul.bf16.gmra.mxu0 %v718
        %v732 = vpop.f32.mrf.mxu0
        %v733 = vadd.f32 0.0, %v732
        %v734 = vpop.f32.mrf.mxu0
        %735 = vdwg.mxu0
        %v737 = vsel %vm716, %v699, 0
        %v740 = vsel %vm716, %v713, 0
        %742 = vmatpush.bf16.xpose.msra.mxu0 0
        %743 = vmatpush.bf16.xpose.msra.mxu0 0
        %744 = vmatpush.bf16.xpose.msra.mxu0 0
        %745 = vmatpush.bf16.xpose.msra.mxu0 0
        %746 = vmatpush.bf16.xpose.msra.mxu0 0
        %747 = vmatpush.bf16.xpose.msra.mxu0 0
        %748 = vmatpush.bf16.xpose.msra.mxu0 0
        %749 = vmatpush.bf16.xpose.msra.mxu0 %v740
        %750 = vmatmul.bf16.gmra.mxu0 %v737
        %v751 = vpop.f32.mrf.mxu0
        %v752 = vadd.f32 0.0, %v751
        %v753 = vpop.f32.mrf.mxu0
        %754 = vdwg.mxu0
        %v756 = vsel %vm716, %v700, 0
        %v759 = vsel %vm716, %v714, 0
        %761 = vmatpush.bf16.xpose.msra.mxu0 0
        %762 = vmatpush.bf16.xpose.msra.mxu0 0
        %763 = vmatpush.bf16.xpose.msra.mxu0 0
        %764 = vmatpush.bf16.xpose.msra.mxu0 0
        %765 = vmatpush.bf16.xpose.msra.mxu0 0
        %766 = vmatpush.bf16.xpose.msra.mxu0 0
        %767 = vmatpush.bf16.xpose.msra.mxu0 0
        %768 = vmatpush.bf16.xpose.msra.mxu0 %v759
        %769 = vmatmul.bf16.gmra.mxu0 %v756
        %v770 = vpop.f32.mrf.mxu0
        %v771 = vadd.f32 0.0, %v770
        %v772 = vpop.f32.mrf.mxu0
        %773 = vdwg.mxu0
        %v775 = vsel %vm716, %v701, 0
        %v778 = vsel %vm716, %v715, 0
        %780 = vmatpush.bf16.xpose.msra.mxu0 0
        %781 = vmatpush.bf16.xpose.msra.mxu0 0
        %782 = vmatpush.bf16.xpose.msra.mxu0 0
        %783 = vmatpush.bf16.xpose.msra.mxu0 0
        %784 = vmatpush.bf16.xpose.msra.mxu0 0
        %785 = vmatpush.bf16.xpose.msra.mxu0 0
        %786 = vmatpush.bf16.xpose.msra.mxu0 0
        %787 = vmatpush.bf16.xpose.msra.mxu0 %v778
        %788 = vmatmul.bf16.gmra.mxu0 %v775
        %v789 = vpop.f32.mrf.mxu0
        %v790 = vadd.f32 0.0, %v789
        %v791 = vpop.f32.mrf.mxu0
        %792 = vdwg.mxu0
        %v793 = vsel %vm716, %v733, -inf
        %794 = vmax.xlane.f32.xlu0 %v793
        %v795 = vpop.xlane.xlu0 %794
        %v796 = vsel %vm716, %v752, -inf
        %797 = vmax.xlane.f32.xlu0 %v796
        %v798 = vpop.xlane.xlu0 %797
        %v799 = vsel %vm716, %v771, -inf
        %800 = vmax.xlane.f32.xlu0 %v799
        %v801 = vpop.xlane.xlu0 %800
        %v802 = vsel %vm716, %v790, -inf
        %803 = vmax.xlane.f32.xlu0 %v802
        %v804 = vpop.xlane.xlu0 %803
        %v805 = vsub.f32 %v733, %v795
        %v806 = vsub.f32 %v752, %v798
        %v807 = vsub.f32 %v771, %v801
        %v808 = vsub.f32 %v790, %v804
        %v809 = vmul.f32 %v805, 1.442695
        %v810 = vpow.pop %v809
        %v811 = vmul.f32 %v806, 1.442695
        %v812 = vpow.pop %v811
        %v813 = vmul.f32 %v807, 1.442695
        %v814 = vpow.pop %v813
        %v815 = vmul.f32 %v808, 1.442695
        %v816 = vpow.pop %v815
        %v817 = vsel %vm716, %v810, 0.0
        %818 = vadd.xlane.f32.xlu0 %v817
        %v819 = vpop.xlane.xlu0 %818
        %v820 = vsel %vm716, %v812, 0.0
        %821 = vadd.xlane.f32.xlu0 %v820
        %v822 = vpop.xlane.xlu0 %821
        %v823 = vsel %vm716, %v814, 0.0
        %824 = vadd.xlane.f32.xlu0 %v823
        %v825 = vpop.xlane.xlu0 %824
        %v826 = vsel %vm716, %v816, 0.0
        %827 = vadd.xlane.f32.xlu0 %v826
        %v828 = vpop.xlane.xlu0 %827
        %v829 = vrcp.pop %v819
        %v830 = vrcp.pop %v822
        %v831 = vrcp.pop %v825
        %v832 = vrcp.pop %v828
        %v833 = vmul.f32 %v810, %v829
        %v834 = vmul.f32 %v812, %v830
        %v835 = vmul.f32 %v814, %v831
        %v836 = vmul.f32 %v816, %v832
        %v837 = vpack.c.bf16 %v833, %v833
        %v838 = vpack.c.bf16 %v834, %v834
        %v839 = vpack.c.bf16 %v835, %v835
        %v840 = vpack.c.bf16 %v836, %v836
        %v842 = vunpack.c.l.b16 %v712
        %v843 = vpack.c.b16 %v842, %v842
        %844 = vrot.lane.b32.xlu0 %v843, 96
        %v845 = vpop.permute.xlu0 %844
        %v847 = vsel %vm716, %v837, 0
        %vm849 = vcmask 1043456
        %v851 = vsel %vm849, %v845, 0
        %853 = vmatpush.bf16.msra.mxu0 0
        %854 = vmatpush.bf16.msra.mxu0 0
        %855 = vmatpush.bf16.msra.mxu0 0
        %856 = vmatpush.bf16.msra.mxu0 0
        %857 = vmatpush.bf16.msra.mxu0 0
        %858 = vmatpush.bf16.msra.mxu0 0
        %859 = vmatpush.bf16.msra.mxu0 0
        %860 = vmatpush.bf16.msra.mxu0 %v851
        %861 = vmatmul.bf16.gmra.mxu0 %v847
        %v862 = vpop.f32.mrf.mxu0
        %v863 = vadd.f32 0.0, %v862
        %v864 = vpop.f32.mrf.mxu0
        %865 = vdwg.mxu0
        %v867 = vunpack.c.l.b16 %v713
        %v868 = vpack.c.b16 %v867, %v867
        %869 = vrot.lane.b32.xlu0 %v868, 96
        %v870 = vpop.permute.xlu0 %869
        %v872 = vsel %vm716, %v838, 0
        %v875 = vsel %vm849, %v870, 0
        %877 = vmatpush.bf16.msra.mxu0 0
        %878 = vmatpush.bf16.msra.mxu0 0
        %879 = vmatpush.bf16.msra.mxu0 0
        %880 = vmatpush.bf16.msra.mxu0 0
        %881 = vmatpush.bf16.msra.mxu0 0
        %882 = vmatpush.bf16.msra.mxu0 0
        %883 = vmatpush.bf16.msra.mxu0 0
        %884 = vmatpush.bf16.msra.mxu0 %v875
        %885 = vmatmul.bf16.gmra.mxu0 %v872
        %v886 = vpop.f32.mrf.mxu0
        %v887 = vadd.f32 0.0, %v886
        %v888 = vpop.f32.mrf.mxu0
        %889 = vdwg.mxu0
        %v891 = vunpack.c.l.b16 %v714
        %v892 = vpack.c.b16 %v891, %v891
        %893 = vrot.lane.b32.xlu0 %v892, 96
        %v894 = vpop.permute.xlu0 %893
        %v896 = vsel %vm716, %v839, 0
        %v899 = vsel %vm849, %v894, 0
        %901 = vmatpush.bf16.msra.mxu0 0
        %902 = vmatpush.bf16.msra.mxu0 0
        %903 = vmatpush.bf16.msra.mxu0 0
        %904 = vmatpush.bf16.msra.mxu0 0
        %905 = vmatpush.bf16.msra.mxu0 0
        %906 = vmatpush.bf16.msra.mxu0 0
        %907 = vmatpush.bf16.msra.mxu0 0
        %908 = vmatpush.bf16.msra.mxu0 %v899
        %909 = vmatmul.bf16.gmra.mxu0 %v896
        %v910 = vpop.f32.mrf.mxu0
        %v911 = vadd.f32 0.0, %v910
        %v912 = vpop.f32.mrf.mxu0
        %913 = vdwg.mxu0
        %v915 = vunpack.c.l.b16 %v715
        %v916 = vpack.c.b16 %v915, %v915
        %917 = vrot.lane.b32.xlu0 %v916, 96
        %v918 = vpop.permute.xlu0 %917
        %v920 = vsel %vm716, %v840, 0
        %v923 = vsel %vm849, %v918, 0
        %925 = vmatpush.bf16.msra.mxu0 0
        %926 = vmatpush.bf16.msra.mxu0 0
        %927 = vmatpush.bf16.msra.mxu0 0
        %928 = vmatpush.bf16.msra.mxu0 0
        %929 = vmatpush.bf16.msra.mxu0 0
        %930 = vmatpush.bf16.msra.mxu0 0
        %931 = vmatpush.bf16.msra.mxu0 0
        %932 = vmatpush.bf16.msra.mxu0 %v923
        %933 = vmatmul.bf16.gmra.mxu0 %v920
        %v934 = vpop.f32.mrf.mxu0
        %v935 = vadd.f32 0.0, %v934
        %v936 = vpop.f32.mrf.mxu0
        %937 = vdwg.mxu0
        %939 = vrot.lane.b32.xlu0 %v887, 8
        %v940 = vpop.permute.xlu0 %939
        %943 = vrot.lane.b32.xlu0 %v911, 16
        %v944 = vpop.permute.xlu0 %943
        %947 = vrot.lane.b32.xlu0 %v935, 24
        %v948 = vpop.permute.xlu0 %947
        %v950 = vsel %vm716, %v863, %v940
        %vm951 = vcmask 130048
        %v952 = vsel %vm951, %v950, %v944
        %vm953 = vcmask 195584
        %v954 = vsel %vm953, %v952, %v948
        %v955 = vpack.c.bf16 %v954, %v954
        %v956 = vld [vmem:[#allocation5] sm:$0xf]
        %v957 = vld [vmem:[#allocation5 + $0x4] sm:$0xf]
        %v958 = vld [vmem:[#allocation5 + $0x8] sm:$0xf]
        %v959 = vld [vmem:[#allocation5 + $0xc] sm:$0xf]
        %v960 = vld [vmem:[%s7] sm:$0x1]
        %v962 = vperm.slane %v960, 0
        %v968 = vunpack.c.l.b16 %v956
        %v969 = vunpack.c.l.b16 %v957
        %v970 = vunpack.c.l.b16 %v958
        %v971 = vunpack.c.l.b16 %v959
        %v972 = vpack.c.b16 %v969, %v968
        %v973 = vpack.c.b16 %v971, %v970
        %v977 = vsel %vm634, %v955, 0
        %979 = vmatpush.bf16.msra.mxu0 0
        %980 = vmatpush.bf16.msra.mxu0 0
        %981 = vmatpush.bf16.msra.mxu0 0
        %982 = vmatpush.bf16.msra.mxu0 0
        %983 = vmatpush.bf16.msra.mxu0 0
        %984 = vmatpush.bf16.msra.mxu0 0
        %985 = vmatpush.bf16.msra.mxu0 %v973
        %986 = vmatpush.bf16.msra.mxu0 %v972
        %987 = vmatmul.bf16.gmra.mxu0 %v977
        %v988 = vpop.f32.mrf.mxu0
        %v989 = vadd.f32 %v962, %v988
        %v990 = vpop.f32.mrf.mxu0
        %991 = vdwg.mxu0
        %v992 = vadd.f32 %v610, %v989
        %v993 = vld [vmem:[%s8] sm:$0x1]
        %v994 = vld [vmem:[%s9] sm:$0x1]
        %v995 = vsel %vm634, %v992, 0.0
        %996 = vadd.xlane.f32.xlu0 %v995
        %v997 = vpop.xlane.xlu0 %996
        %v998 = vrcp.pop 32.0
        %v999 = vmul.f32 32.0, %v998
        %v1000 = vsub.f32 1.0, %v999
        %v1001 = vmul.f32 %v998, %v1000
        %v1002 = vadd.f32 %v998, %v1001
        %vm1003 = vweird.f32 %v998
        %v1004 = vsel %vm1003, %v998, %v1002
        %v1005 = vmul.f32 %v997, %v1004
        %v1006 = vsub.f32 %v992, %v1005
        %v1007 = vmul.f32 %v1006, %v1006
        %v1008 = vsel %vm634, %v1007, 0.0
        %1009 = vadd.xlane.f32.xlu0 %v1008
        %v1010 = vpop.xlane.xlu0 %1009
        %v1011 = vmul.f32 %v1010, %v1004
        %v1012 = vadd.f32 %v1011, 1e-05
        %v1013 = vrsqrt.pop %v1012
        %v1014 = vmul.f32 %v1013, %v1012
        %v1015 = vmul.f32 %v1014, %v1013
        %v1016 = vmul.f32 0.5, %v1015
        %v1017 = vsub.f32 1.5, %v1016
        %v1018 = vmul.f32 %v1013, %v1017
        %vm1019 = vweird.f32 %v1012
        %vm1020 = vweird.f32 %v1013
        %vm1021 = vmor %vm1019, %vm1020
        %v1022 = vsel %vm1021, %v1013, %v1018
        %v1023 = vmul.f32 %v1006, %v1022
        %v1025 = vperm.slane %v993, 0
        %v1027 = vmul.f32 %v1023, %v1025
        %v1029 = vperm.slane %v994, 0
        %v1031 = vadd.f32 %v1027, %v1029
        %v1032 = vpack.c.bf16 %v1031, %v1031
        %v1033 = vld [vmem:[#allocation7] sm:$0xf]
        %v1034 = vld [vmem:[#allocation7 + $0x4] sm:$0xf]
        %v1035 = vld [vmem:[#allocation7 + $0x8] sm:$0xf]
        %v1036 = vld [vmem:[#allocation7 + $0xc] sm:$0xf]
        %v1037 = vld [vmem:[%s11] sm:$0x1]
        %v1039 = vperm.slane %v1037, 0
        %v1045 = vunpack.c.l.b16 %v1033
        %v1046 = vunpack.c.l.b16 %v1034
        %v1047 = vunpack.c.l.b16 %v1035
        %v1048 = vunpack.c.l.b16 %v1036
        %v1049 = vpack.c.b16 %v1046, %v1045
        %v1050 = vpack.c.b16 %v1048, %v1047
        %v1054 = vsel %vm634, %v1032, 0
        %1056 = vmatpush.bf16.msra.mxu0 0
        %1057 = vmatpush.bf16.msra.mxu0 0
        %1058 = vmatpush.bf16.msra.mxu0 0
        %1059 = vmatpush.bf16.msra.mxu0 0
        %1060 = vmatpush.bf16.msra.mxu0 0
        %1061 = vmatpush.bf16.msra.mxu0 0
        %1062 = vmatpush.bf16.msra.mxu0 %v1050
        %1063 = vmatpush.bf16.msra.mxu0 %v1049
        %1064 = vmatmul.bf16.gmra.mxu0 %v1054
        %v1065 = vpop.f32.mrf.mxu0
        %v1066 = vadd.f32 %v1039, %v1065
        %v1067 = vpop.f32.mrf.mxu0
        %1068 = vdwg.mxu0
        %v1069 = vmax.f32 %v1066, 0.0
        %v1070 = vpack.c.bf16 %v1069, %v1069
        %v1071 = vld [vmem:[%s12] sm:$0xf]
        %v1072 = vld [vmem:[%s12 + $0x4] sm:$0xf]
        %v1073 = vld [vmem:[%s12 + $0x8] sm:$0xf]
        %v1074 = vld [vmem:[%s12 + $0xc] sm:$0xf]
        %v1075 = vld [vmem:[%s12 + $0x10] sm:$0xf]
        %v1076 = vld [vmem:[%s12 + $0x14] sm:$0xf]
        %v1077 = vld [vmem:[%s12 + $0x18] sm:$0xf]
        %v1078 = vld [vmem:[%s12 + $0x1c] sm:$0xf]
        %v1079 = vld [vmem:[%s13] sm:$0x1]
        %v1081 = vperm.slane %v1079, 0
        %v1091 = vunpack.c.l.b16 %v1071
        %v1092 = vunpack.c.l.b16 %v1072
        %v1093 = vunpack.c.l.b16 %v1073
        %v1094 = vunpack.c.l.b16 %v1074
        %v1095 = vunpack.c.l.b16 %v1075
        %v1096 = vunpack.c.l.b16 %v1076
        %v1097 = vunpack.c.l.b16 %v1077
        %v1098 = vunpack.c.l.b16 %v1078
        %v1099 = vpack.c.b16 %v1092, %v1091
        %v1100 = vpack.c.b16 %v1094, %v1093
        %v1101 = vpack.c.b16 %v1096, %v1095
        %v1102 = vpack.c.b16 %v1098, %v1097
        %vm1107 = vcmask 523264
        %v1109 = vsel %vm1107, %v1070, 0
        %1111 = vmatpush.bf16.msra.mxu0 0
        %1112 = vmatpush.bf16.msra.mxu0 0
        %1113 = vmatpush.bf16.msra.mxu0 0
        %1114 = vmatpush.bf16.msra.mxu0 0
        %1115 = vmatpush.bf16.msra.mxu0 %v1102
        %1116 = vmatpush.bf16.msra.mxu0 %v1101
        %1117 = vmatpush.bf16.msra.mxu0 %v1100
        %1118 = vmatpush.bf16.msra.mxu0 %v1099
        %1119 = vmatmul.bf16.gmra.mxu0 %v1109
        %v1120 = vpop.f32.mrf.mxu0
        %v1121 = vadd.f32 %v1081, %v1120
        %v1122 = vpop.f32.mrf.mxu0
        %1123 = vdwg.mxu0
        %v1124 = vadd.f32 %v1031, %v1121
        %v1125 = vld [vmem:[%s14] sm:$0x1]
        %v1126 = vld [vmem:[%s15] sm:$0x1]
        %v1127 = vsel %vm634, %v1124, 0.0
        %1128 = vadd.xlane.f32.xlu0 %v1127
        %v1129 = vpop.xlane.xlu0 %1128
        %v1130 = vmul.f32 %v1129, %v1004
        %v1131 = vsub.f32 %v1124, %v1130
        %v1132 = vmul.f32 %v1131, %v1131
        %v1133 = vsel %vm634, %v1132, 0.0
        %1134 = vadd.xlane.f32.xlu0 %v1133
        %v1135 = vpop.xlane.xlu0 %1134
        %v1136 = vmul.f32 %v1135, %v1004
        %v1137 = vadd.f32 %v1136, 1e-05
        %v1138 = vrsqrt.pop %v1137
        %v1139 = vmul.f32 %v1138, %v1137
        %v1140 = vmul.f32 %v1139, %v1138
        %v1141 = vmul.f32 0.5, %v1140
        %v1142 = vsub.f32 1.5, %v1141
        %v1143 = vmul.f32 %v1138, %v1142
        %vm1144 = vweird.f32 %v1137
        %vm1145 = vweird.f32 %v1138
        %vm1146 = vmor %vm1144, %vm1145
        %v1147 = vsel %vm1146, %v1138, %v1143
        %v1148 = vmul.f32 %v1131, %v1147
        %v1150 = vperm.slane %v1125, 0
        %v1152 = vmul.f32 %v1148, %v1150
        %v1154 = vperm.slane %v1126, 0
        %v1156 = vadd.f32 %v1152, %v1154
        %1157 = vst.msk [vmem:[%s597] sm:$0xff] %vm634, %v1156
        %s1158 = sand.u32 %s402, 1
        %s1159 = scalar_lea.sflag [#allocation4], %s1158
        %s1160 = sand.u32 %s402, 1
        %s1161 = smul.addr %s1160, 8
        %s1162 = scalar_lea.vmem [#allocation8], %s1161
        // Predicated region
        $region97: #{tpu_custom_call.1} parent=83 // pred_check
          %p1163 = pneg %p412
        $region98: #{tpu_custom_call.1} parent=83 // pred_check_branch
          %1165 = sbr.rel (%p1163) target = $region100
        $region99: #{tpu_custom_call.1} parent=83 // pred_region
          %1167 = vsyncadd %s1159, 0
          %s1168 = sadd.s32 %s37, %s36
          %s1169 = smul.addr %s1168, 8
          %s1170 = scalar_lea.hbm %s16, %s1169
          %s1172 = sshll.u32 %s1162, 4
          %s1173 = int_to_ptr.vmem [resolvable:$true] %s1172
          %s1174 = sshll.u32 %s1170, 4
          %s1175 = int_to_ptr.hbm [resolvable:$true] %s1174
          %1177 = dma.vmem_to_hbm [thread:$0]  %s1173, 128, %s1175, %s1159
        $region100: #{tpu_custom_call.1} parent=83 // pred_fallthru
          _
      $region84: #{tpu_custom_call.1} parent=5 // pred_fallthru
        _
      %p1178 = scmp.le.s32.totalorder 2, %s27
      // Predicated region
      $region101: #{tpu_custom_call.1} parent=5 // pred_check
        %p1179 = pneg %p1178
      $region102: #{tpu_custom_call.1} parent=5 // pred_check_branch
        %1181 = sbr.rel (%p1179) target = $region104
      $region103: #{tpu_custom_call.1} parent=5 // pred_region
        %s1182 = ssub.s32 %s27, 2
        // Predicated region
        $region105: #{tpu_custom_call.1} parent=103 // pred_check
          %p1183 = pneg %p418
        $region106: #{tpu_custom_call.1} parent=103 // pred_check_branch
          %1185 = sbr.rel (%p1183) target = $region108
        $region107: #{tpu_custom_call.1} parent=103 // pred_region
          %s1186 = sand.u32 %s403, 1
          %s1187 = scalar_lea.sflag [#allocation4], %s1186
          %s1188 = sand.u32 %s403, 1
          %s1189 = smul.addr %s1188, 8
          %s1190 = scalar_lea.vmem [#allocation8], %s1189
          %1192 = dma.done %s1187, 128
        $region108: #{tpu_custom_call.1} parent=103 // pred_fallthru
          _
      $region104: #{tpu_custom_call.1} parent=5 // pred_fallthru
        _
    $region6: #{tpu_custom_call.1} parent=1 // loop_footer
      %s31 = sadd.s32 1, %s27
    $region7: #{tpu_custom_call.1} parent=1 // loop_footer_branch
      %26 = sbr.rel target = $region3
    $region8: #{tpu_custom_call.1} parent=1 // loop_exit
      _
    %1193 = vsyncpa [#allocation3], 1
    %s1194 = scalar_lea.sflag [#allocation3], 1
    %1195 = vsyncpa %s1194, 1
    %1196 = vsyncpa [#allocation6], 1
    %1197 = vsyncpa [#allocation4], 1
    %s1198 = scalar_lea.sflag [#allocation4], 1
    %1199 = vsyncpa %s1198, 1

</llo_original>
